<compile_context>
chip_gen: v6e
topology: v6e:2x2x1
jax: 0.10.0
libtpu: 0.0.40
codegen_flags: <defaults>
</compile_context>

<pallas_src>
import numpy as np
import jax
import jax.numpy as jnp
from jax.experimental import pallas as pl
from jax.experimental.pallas import tpu as pltpu

# ----------------------- static configuration (small shapes) -----------------
B    = 2            # batch
T    = 64           # time samples (divisible by 4 * 8)
C    = 4            # EEG electrodes  (input_shape[2])
F1   = 8            # cnn_temporal_kernels
K0   = 33           # cnn_temporal_kernelsize[0]
D    = 2            # cnn_spatial_depth_multiplier
F2   = F1 * D       # spatial / septemporal / pointwise kernels = 16
K2   = 17           # cnn_septemporal_kernelsize[0]
PAD2 = (K2 - 1) // 2
P1K  = 4            # cnn_spatial_pool
P3K  = 8            # cnn_septemporal_pool
T4   = T // P1K     # 16
T32  = T4 // P3K    # 2  -> LSTM sequence length
H    = 32           # lstm_hidden_size (kept small)
NCLS = 4            # dense_n_neurons
OUT_PAD = 128       # lane-dense padded output width
KPAD = 144          # C*K0 = 132 padded to a bf16-sublane-friendly contraction size
EPS  = 1e-5         # BatchNorm eps


def _elu(x):
    return jnp.where(x > 0, x, jnp.exp(jnp.minimum(x, 0.0)) - 1.0)


def _rot_rows(x, shift, n):
    """result[i] = x[(i - shift) % n]  (jnp.roll convention), static shift."""
    s = shift % n
    if s == 0:
        return x
    return jnp.concatenate([x[n - s:, :], x[:n - s, :]], axis=0)


# --------------------------- the single fused kernel --------------------------
def fused_eegnet_kernel(x0_ref, wfold_ref, ppool_ref, wmask2_ref, w3f_ref,
                        p3_ref, wlstm_ref, wd_ref, bias_ref, out_ref):
    f32, bf16 = jnp.float32, jnp.bfloat16
    NR = B * T4

    # packed row-vector constants (f32)
    bfold = bias_ref[0:1, 0:F2]          # folded conv_0..bn_1 bias
    bias3 = bias_ref[1:2, 0:F2]          # folded bn_3 shift
    b0    = bias_ref[2:3, :]             # LSTM layer-0 gate bias (8H)
    b1    = bias_ref[3:4, :]             # LSTM layer-1 gate bias (8H)
    bdF   = bias_ref[4:5, 0:OUT_PAD]     # folded dense bias (pads ~ -1e30)

    # ---- conv_0 + bn_0 + conv_1 + bn_1 (folded) -> one matmul, then ELU -------
    y1 = _elu(jnp.dot(x0_ref[...], wfold_ref[...],
                      preferred_element_type=f32) + bfold)             # (B*T, F2)

    # ---- pool_1 (avg 4, block-diagonal over batch) as one small matmul --------
    pooled = jnp.dot(ppool_ref[...], y1.astype(bf16),
                     preferred_element_type=f32)                       # (B*T4, F2)
    # TODO(synk): dropout_1 (p=0.5) is train-only randomness; eval = identity.

    # ---- conv_2 depthwise temporal, 'same': K2 sublane rotations + masked FMA -
    # wmask2[k] = w2[k, :] broadcast over rows, zeroed where the 'same' padding /
    # batch boundary would be read (so the rotations never leak across batches).
    acc = pooled * wmask2_ref[PAD2]
    for k in range(K2):
        if k == PAD2:
            continue
        acc = acc + _rot_rows(pooled, PAD2 - k, NR) * wmask2_ref[k]

    # ---- conv_3 (pointwise, bn_3 folded into the weights) + ELU ---------------
    y3 = _elu(jnp.dot(acc.astype(bf16), w3f_ref[...],
                      preferred_element_type=f32) + bias3)             # (B*T4, F2)

    # ---- pool_3 (avg 8) + permute to time-major rows (t*B + b) ----------------
    seq = jnp.dot(p3_ref[...], y3.astype(bf16),
                  preferred_element_type=f32)                          # (T32*B, F2)
    # TODO(synk): dropout_3 (p=0.5) is train-only randomness; eval = identity.

    # ---- packed bidirectional LSTM weights ------------------------------------
    wih0 = wlstm_ref[0:2 * F2, :]                                      # (2*F2, 8H)
    whh0 = wlstm_ref[2 * F2:2 * F2 + 2 * H, :]                         # (2H,   8H)
    wih1 = wlstm_ref[2 * F2 + 2 * H:2 * F2 + 6 * H, :]                 # (4H,   8H)
    whh1 = wlstm_ref[2 * F2 + 6 * H:2 * F2 + 8 * H, :]                 # (2H,   8H)

    # Gate column layout (host-prepared): [i_f,i_b | f_f,f_b | o_f,o_b | g_f,g_b].
    def run_layer(xs, wih, whh, bias):
        # Hoist the input projection for all steps & both directions into one
        # matmul; only h @ W_hh stays inside the serial recurrence (and step 0
        # skips it because h_0 == 0).
        xin = [jnp.concatenate([xs[st], xs[T32 - 1 - st]], axis=1)
               for st in range(T32)]                                   # (B, 2*Fin)
        gx_all = jnp.dot(jnp.concatenate(xin, axis=0).astype(bf16), wih,
                         preferred_element_type=f32) + bias            # (T32*B, 8H)
        h = jnp.zeros((B, 2 * H), f32)
        c = jnp.zeros((B, 2 * H), f32)
        h_steps = []
        for st in range(T32):
            g = gx_all[st * B:(st + 1) * B, :]
            if st > 0:
                g = g + jnp.dot(h.astype(bf16), whh, preferred_element_type=f32)
            sig = jax.nn.sigmoid(g[:, :6 * H])      # [i | f | o] slabs
            gg  = jnp.tanh(g[:, 6 * H:])            # [g] slab
            c = sig[:, 2 * H:4 * H] * c + sig[:, 0:2 * H] * gg
            h = sig[:, 4 * H:6 * H] * jnp.tanh(c)
            h_steps.append(h)
        # time-ordered bidirectional outputs:
        # h_steps[s][:, :H] = fwd at time s, h_steps[s][:, H:] = bwd at time T32-1-s
        return [jnp.concatenate([h_steps[t][:, :H],
                                 h_steps[T32 - 1 - t][:, H:]], axis=1)
                for t in range(T32)]

    xs0 = [seq[t * B:(t + 1) * B, :] for t in range(T32)]
    y_l1 = run_layer(xs0, wih0, whh0, b0)
    # TODO(synk): inter-layer LSTM dropout (p=0.5) is train-only; eval = identity.
    y_l2 = run_layer(y_l1, wih1, whh1, b1)

    # ---- (bn_lstm folded into dense) + dense + log_softmax --------------------
    last = y_l2[T32 - 1]                                               # == x[:, -1, :]
    logits = jnp.dot(last.astype(bf16), wd_ref[...],
                     preferred_element_type=f32) + bdF                 # (B, 128)
    m = jnp.max(logits, axis=1, keepdims=True)
    z = logits - m
    out_ref[...] = z - jnp.log(jnp.sum(jnp.exp(z), axis=1, keepdims=True))


# ------------------------------ parameter setup -------------------------------
def build_params(key):
    ks = iter(jax.random.split(key, 32))

    def nrm(shape, scale=0.1):
        return scale * jax.random.normal(next(ks), shape, jnp.float32)

    def bn(nf):
        gamma = 1.0 + nrm((nf,), 0.05)
        beta  = nrm((nf,), 0.05)
        mean  = nrm((nf,), 0.05)
        var   = 1.0 + 0.1 * jax.random.uniform(next(ks), (nf,), jnp.float32)
        scale = gamma / jnp.sqrt(var + EPS)
        return scale, beta - mean * scale

    p = {}
    p["w0"] = nrm((K0, F1))                                   # temporal filters
    w1 = nrm((F2, C), 0.3)                                    # depthwise spatial
    n = jnp.linalg.norm(w1, axis=1, keepdims=True)            # max_norm = 1.0 (renorm)
    p["w1"] = w1 * jnp.minimum(1.0, 1.0 / jnp.maximum(n, 1e-7))
    p["w2"] = nrm((K2, F2))                                   # depthwise temporal
    p["w3"] = nrm((F2, F2))                                   # pointwise (in, out)
    p["bn0"], p["bn1"], p["bn3"], p["bn_lstm"] = bn(F1), bn(F2), bn(F2), bn(2 * H)

    def lstm_layer(fin):                                      # (W_ih, W_hh, b_ih+b_hh)
        return nrm((2, 4 * H, fin)), nrm((2, 4 * H, H)), nrm((2, 4 * H))
    p["l0"] = lstm_layer(F2)
    p["l1"] = lstm_layer(2 * H)

    wd = nrm((NCLS, 2 * H), 0.2)                              # max_norm = 0.25 (renorm)
    n = jnp.linalg.norm(wd, axis=1, keepdims=True)
    p["wd"] = wd * jnp.minimum(1.0, 0.25 / jnp.maximum(n, 1e-7))
    p["bd"] = nrm((NCLS,))
    return p


def prepare_params(params):
    """One-time host-side construction & folding of all kernel operand matrices."""
    w0 = np.asarray(params["w0"], np.float32)                 # (K0, F1)
    w1 = np.asarray(params["w1"], np.float32)                 # (F2, C)
    w2 = np.asarray(params["w2"], np.float32)                 # (K2, F2)
    w3 = np.asarray(params["w3"], np.float32)                 # (F2, F2) in->out

    s0, sh0 = (np.asarray(a, np.float32) for a in params["bn0"])
    s1, sh1 = (np.asarray(a, np.float32) for a in params["bn1"])
    s3, sh3 = (np.asarray(a, np.float32) for a in params["bn3"])
    bns, bnb = (np.asarray(a, np.float32) for a in params["bn_lstm"])

    # conv_0 as matmul: im2col column c*K0+k hits output column c*F1+f
    W0big = np.kron(np.eye(C, dtype=np.float32), w0).astype(np.float32)   # (C*K0, C*F1)
    # conv_1 (grouped spatial conv) as matmul
    W1big = np.zeros((C * F1, F2), np.float32)
    for c in range(C):
        for o in range(F2):
            W1big[c * F1 + o // D, o] = w1[o, c]

    # Fold conv_0 + bn_0 + conv_1 + bn_1 into one weight + bias (exact rewrite).
    s0t, sh0t = np.tile(s0, C), np.tile(sh0, C)
    W1eff = (s0t[:, None] * W1big) * s1[None, :]
    Wfold = W0big @ W1eff                                     # (C*K0, F2)
    bfold = (sh0t[None, :] @ W1big) * s1[None, :] + sh1[None, :]
    WfoldP = np.zeros((KPAD, F2), np.float32)
    WfoldP[:C * K0] = Wfold                                   # zero-padded contraction

    # pool_1 (avg 4 over time), block diagonal over batch
    Ppool = np.zeros((B * T4, B * T), np.float32)
    for b in range(B):
        for t in range(T4):
            Ppool[b * T4 + t, b * T + P1K * t: b * T + P1K * (t + 1)] = 1.0 / P1K

    # conv_2 taps with 'same' edge / batch-boundary masks baked in: (K2, B*T4, F2)
    wmask2 = np.zeros((K2, B * T4, F2), np.float32)
    for k in range(K2):
        for t in range(T4):
            if 0 <= t - PAD2 + k < T4:
                for b in range(B):
                    wmask2[k, b * T4 + t, :] = w2[k]

    # conv_3 + bn_3 folded
    w3f = w3 * s3[None, :]
    bias3 = sh3[None, :]

    # pool_3 (avg 8 over time) + permute output rows to time-major (row t*B + b)
    P3big = np.zeros((T32 * B, B * T4), np.float32)
    for t in range(T32):
        for b in range(B):
            P3big[t * B + b, b * T4 + P3K * t: b * T4 + P3K * (t + 1)] = 1.0 / P3K

    # fused bidirectional LSTM weights: block-diagonal, gate columns
    # [i_f,i_b | f_f,f_b | o_f,o_b | g_f,g_b], each block H wide (total 8H).
    def fuse_lstm(layer):
        wih, whh, b = (np.asarray(a, np.float32) for a in layer)
        fin = wih.shape[2]
        Wih = np.zeros((2 * fin, 8 * H), np.float32)
        Whh = np.zeros((2 * H, 8 * H), np.float32)
        bb  = np.zeros((1, 8 * H), np.float32)
        src = {"i": 0, "f": 1, "g": 2, "o": 3}                # PyTorch gate order
        for gi, gname in enumerate(("i", "f", "o", "g")):
            sg = src[gname]
            for d in range(2):                                # 0 = fwd, 1 = bwd
                col = (2 * gi + d) * H
                Wih[d * fin:(d + 1) * fin, col:col + H] = wih[d, sg * H:(sg + 1) * H, :].T
                Whh[d * H:(d + 1) * H,     col:col + H] = whh[d, sg * H:(sg + 1) * H, :].T
                bb[0, col:col + H] = b[d, sg * H:(sg + 1) * H]
        return Wih, Whh, bb

    Wih0, Whh0, b0 = fuse_lstm(params["l0"])
    Wih1, Whh1, b1 = fuse_lstm(params["l1"])
    Wlstm = np.concatenate([Wih0, Whh0, Wih1, Whh1], axis=0)  # (2F2+8H, 8H) = (288, 256)

    # dense layer: fold bn_lstm, pad to 128 lanes (pad lanes get -1e30 bias so they
    # vanish under the softmax normalization), so the single output store is lane-dense.
    wd = np.asarray(params["wd"], np.float32)                 # (NCLS, 2H)
    bd = np.asarray(params["bd"], np.float32)                 # (NCLS,)
    WdP = np.zeros((2 * H, OUT_PAD), np.float32)
    WdP[:, :NCLS] = wd.T
    bdP = np.full((1, OUT_PAD), -1e30, np.float32)
    bdP[0, :NCLS] = bd
    WdF = bns[:, None] * WdP
    bdF = bnb[None, :] @ WdP + bdP

    # single packed bias constant (f32): rows [bfold, bias3, b0, b1, bdF]
    bias_pack = np.zeros((8, 8 * H), np.float32)
    bias_pack[0, :F2] = bfold[0]
    bias_pack[1, :F2] = bias3[0]
    bias_pack[2, :] = b0[0]
    bias_pack[3, :] = b1[0]
    bias_pack[4, :OUT_PAD] = bdF[0]

    bf = jnp.bfloat16
    return (jnp.asarray(WfoldP, bf), jnp.asarray(Ppool, bf),
            jnp.asarray(wmask2, jnp.float32), jnp.asarray(w3f, bf),
            jnp.asarray(P3big, bf), jnp.asarray(Wlstm, bf),
            jnp.asarray(WdF, bf), jnp.asarray(bias_pack, jnp.float32))


# -------------------------------- forward ------------------------------------
def _im2col_conv0(x):                                         # x: (B, T, C)
    pad = (K0 - 1) // 2
    xp = jnp.pad(x, ((0, 0), (pad, pad), (0, 0)))
    cols = jnp.stack([xp[:, k:k + T, :] for k in range(K0)], axis=-1)   # (B, T, C, K0)
    flat = cols.reshape(B * T, C * K0)
    flat = jnp.pad(flat, ((0, 0), (0, KPAD - C * K0)))        # zero-pad contraction
    return flat.astype(jnp.bfloat16)


@jax.jit
def eegnet_lstm_forward(x, prep):
    # x: (B, T, C, 1) -> single fused Pallas kernel -> (B, NCLS) log-probs
    x0 = _im2col_conv0(x[..., 0])                             # (B*T, KPAD) bf16
    out_pad = pl.pallas_call(
        fused_eegnet_kernel,
        out_shape=jax.ShapeDtypeStruct((B, OUT_PAD), jnp.float32),
    )(x0, *prep)
    return out_pad[:, :NCLS]


# ---------------------------------- main --------------------------------------
if __name__ == "__main__":
    key = jax.random.PRNGKey(0)
    kx, kp = jax.random.split(key)
    x = jax.random.normal(kx, (B, T, C, 1), jnp.float32)
    params = build_params(kp)
    prep = prepare_params(params)       # one-time host prep, outside the jitted path

    out = eegnet_lstm_forward(x, prep)
    out = jax.block_until_ready(out)

    assert out.shape == (B, NCLS)
    assert bool(jnp.all(jnp.isfinite(out)))
    # log-softmax sanity: rows exponentiate to the probability simplex
    assert bool(jnp.allclose(jnp.sum(jnp.exp(out), axis=1), 1.0, atol=1e-4))
    print("KERNEL_OK")
</pallas_src>

<mosaic_0001>
module attributes {stable_mosaic.version = 11 : i64} {
  func.func @fused_eegnet_kernel(%arg0: memref<128x144xbf16, #tpu.memory_space<vmem>>, %arg1: memref<144x16xbf16, #tpu.memory_space<vmem>>, %arg2: memref<32x128xbf16, #tpu.memory_space<vmem>>, %arg3: memref<17x32x16xf32, #tpu.memory_space<vmem>>, %arg4: memref<16x16xbf16, #tpu.memory_space<vmem>>, %arg5: memref<4x32xbf16, #tpu.memory_space<vmem>>, %arg6: memref<288x256xbf16, #tpu.memory_space<vmem>>, %arg7: memref<64x128xbf16, #tpu.memory_space<vmem>>, %arg8: memref<8x256xf32, #tpu.memory_space<vmem>>, %arg9: memref<2x128xf32, #tpu.memory_space<vmem>>) attributes {dimension_semantics = [], scalar_prefetch = 0 : i64, scratch_operands = 0 : i64, tpu.core_type = #tpu.core_type<tc>} {
    %c0 = arith.constant 0 : index
    %c0_0 = arith.constant 0 : index
    %0 = vector.load %arg8[%c0, %c0_0] : memref<8x256xf32, #tpu.memory_space<vmem>>, vector<1x16xf32>
    %c1 = arith.constant 1 : index
    %c0_1 = arith.constant 0 : index
    %1 = vector.load %arg8[%c1, %c0_1] : memref<8x256xf32, #tpu.memory_space<vmem>>, vector<1x16xf32>
    %c2 = arith.constant 2 : index
    %c0_2 = arith.constant 0 : index
    %2 = vector.load %arg8[%c2, %c0_2] : memref<8x256xf32, #tpu.memory_space<vmem>>, vector<1x256xf32>
    %c3 = arith.constant 3 : index
    %c0_3 = arith.constant 0 : index
    %3 = vector.load %arg8[%c3, %c0_3] : memref<8x256xf32, #tpu.memory_space<vmem>>, vector<1x256xf32>
    %c4 = arith.constant 4 : index
    %c0_4 = arith.constant 0 : index
    %4 = vector.load %arg8[%c4, %c0_4] : memref<8x256xf32, #tpu.memory_space<vmem>>, vector<1x128xf32>
    %c0_5 = arith.constant 0 : index
    %c0_6 = arith.constant 0 : index
    %5 = vector.load %arg0[%c0_5, %c0_6] : memref<128x144xbf16, #tpu.memory_space<vmem>>, vector<128x144xbf16>
    %c0_7 = arith.constant 0 : index
    %c0_8 = arith.constant 0 : index
    %6 = vector.load %arg1[%c0_7, %c0_8] : memref<144x16xbf16, #tpu.memory_space<vmem>>, vector<144x16xbf16>
    %cst = arith.constant dense<0.000000e+00> : vector<128x16xf32>
    %7 = tpu.matmul %5, %6, %cst {dimension_numbers = #tpu.dot_dimension_numbers<[1], [0], [0], [1], [0, 0, 1, 1], [], []>} : vector<128x144xbf16>, vector<144x16xbf16>, vector<128x16xf32> -> vector<128x16xf32>
    %8 = vector.broadcast %0 : vector<1x16xf32> to vector<128x16xf32>
    %9 = arith.addf %7, %8 : vector<128x16xf32>
    %cst_9 = arith.constant 0.000000e+00 : f32
    %10 = vector.broadcast %cst_9 : f32 to vector<128x16xf32>
    %11 = arith.cmpf ogt, %9, %10 : vector<128x16xf32>
    %cst_10 = arith.constant 0.000000e+00 : f32
    %12 = vector.broadcast %cst_10 : f32 to vector<128x16xf32>
    %13 = arith.minimumf %9, %12 : vector<128x16xf32>
    %14 = math.exp %13 : vector<128x16xf32>
    %cst_11 = arith.constant 1.000000e+00 : f32
    %15 = vector.broadcast %cst_11 : f32 to vector<128x16xf32>
    %16 = arith.subf %14, %15 : vector<128x16xf32>
    %17 = arith.select %11, %9, %16 : vector<128x16xi1>, vector<128x16xf32>
    %c0_12 = arith.constant 0 : index
    %c0_13 = arith.constant 0 : index
    %18 = vector.load %arg2[%c0_12, %c0_13] : memref<32x128xbf16, #tpu.memory_space<vmem>>, vector<32x128xbf16>
    %19 = arith.truncf %17 : vector<128x16xf32> to vector<128x16xbf16>
    %cst_14 = arith.constant dense<0.000000e+00> : vector<32x16xf32>
    %20 = tpu.matmul %18, %19, %cst_14 {dimension_numbers = #tpu.dot_dimension_numbers<[1], [0], [0], [1], [0, 0, 1, 1], [], []>} : vector<32x128xbf16>, vector<128x16xbf16>, vector<32x16xf32> -> vector<32x16xf32>
    %c8 = arith.constant 8 : index
    %c0_15 = arith.constant 0 : index
    %c0_16 = arith.constant 0 : index
    %21 = vector.load %arg3[%c8, %c0_15, %c0_16] : memref<17x32x16xf32, #tpu.memory_space<vmem>>, vector<1x32x16xf32>
    %22 = vector.shape_cast %21 : vector<1x32x16xf32> to vector<32x16xf32>
    %23 = arith.mulf %20, %22 : vector<32x16xf32>
    %24 = vector.extract_strided_slice %20 {offsets = [24, 0], sizes = [8, 16], strides = [1, 1]} : vector<32x16xf32> to vector<8x16xf32>
    %25 = vector.extract_strided_slice %20 {offsets = [0, 0], sizes = [24, 16], strides = [1, 1]} : vector<32x16xf32> to vector<24x16xf32>
    %26 = tpu.concatenate %24, %25 in 0 : vector<8x16xf32>, vector<24x16xf32> -> vector<32x16xf32>
    %c0_17 = arith.constant 0 : index
    %c0_18 = arith.constant 0 : index
    %c0_19 = arith.constant 0 : index
    %27 = vector.load %arg3[%c0_17, %c0_18, %c0_19] : memref<17x32x16xf32, #tpu.memory_space<vmem>>, vector<1x32x16xf32>
    %28 = vector.shape_cast %27 : vector<1x32x16xf32> to vector<32x16xf32>
    %29 = arith.mulf %26, %28 : vector<32x16xf32>
    %30 = arith.addf %23, %29 : vector<32x16xf32>
    %31 = vector.extract_strided_slice %20 {offsets = [25, 0], sizes = [7, 16], strides = [1, 1]} : vector<32x16xf32> to vector<7x16xf32>
    %32 = vector.extract_strided_slice %20 {offsets = [0, 0], sizes = [25, 16], strides = [1, 1]} : vector<32x16xf32> to vector<25x16xf32>
    %33 = tpu.concatenate %31, %32 in 0 : vector<7x16xf32>, vector<25x16xf32> -> vector<32x16xf32>
    %c1_20 = arith.constant 1 : index
    %c0_21 = arith.constant 0 : index
    %c0_22 = arith.constant 0 : index
    %34 = vector.load %arg3[%c1_20, %c0_21, %c0_22] : memref<17x32x16xf32, #tpu.memory_space<vmem>>, vector<1x32x16xf32>
    %35 = vector.shape_cast %34 : vector<1x32x16xf32> to vector<32x16xf32>
    %36 = arith.mulf %33, %35 : vector<32x16xf32>
    %37 = arith.addf %30, %36 : vector<32x16xf32>
    %38 = vector.extract_strided_slice %20 {offsets = [26, 0], sizes = [6, 16], strides = [1, 1]} : vector<32x16xf32> to vector<6x16xf32>
    %39 = vector.extract_strided_slice %20 {offsets = [0, 0], sizes = [26, 16], strides = [1, 1]} : vector<32x16xf32> to vector<26x16xf32>
    %40 = tpu.concatenate %38, %39 in 0 : vector<6x16xf32>, vector<26x16xf32> -> vector<32x16xf32>
    %c2_23 = arith.constant 2 : index
    %c0_24 = arith.constant 0 : index
    %c0_25 = arith.constant 0 : index
    %41 = vector.load %arg3[%c2_23, %c0_24, %c0_25] : memref<17x32x16xf32, #tpu.memory_space<vmem>>, vector<1x32x16xf32>
    %42 = vector.shape_cast %41 : vector<1x32x16xf32> to vector<32x16xf32>
    %43 = arith.mulf %40, %42 : vector<32x16xf32>
    %44 = arith.addf %37, %43 : vector<32x16xf32>
    %45 = vector.extract_strided_slice %20 {offsets = [27, 0], sizes = [5, 16], strides = [1, 1]} : vector<32x16xf32> to vector<5x16xf32>
    %46 = vector.extract_strided_slice %20 {offsets = [0, 0], sizes = [27, 16], strides = [1, 1]} : vector<32x16xf32> to vector<27x16xf32>
    %47 = tpu.concatenate %45, %46 in 0 : vector<5x16xf32>, vector<27x16xf32> -> vector<32x16xf32>
    %c3_26 = arith.constant 3 : index
    %c0_27 = arith.constant 0 : index
    %c0_28 = arith.constant 0 : index
    %48 = vector.load %arg3[%c3_26, %c0_27, %c0_28] : memref<17x32x16xf32, #tpu.memory_space<vmem>>, vector<1x32x16xf32>
    %49 = vector.shape_cast %48 : vector<1x32x16xf32> to vector<32x16xf32>
    %50 = arith.mulf %47, %49 : vector<32x16xf32>
    %51 = arith.addf %44, %50 : vector<32x16xf32>
    %52 = vector.extract_strided_slice %20 {offsets = [28, 0], sizes = [4, 16], strides = [1, 1]} : vector<32x16xf32> to vector<4x16xf32>
    %53 = vector.extract_strided_slice %20 {offsets = [0, 0], sizes = [28, 16], strides = [1, 1]} : vector<32x16xf32> to vector<28x16xf32>
    %54 = tpu.concatenate %52, %53 in 0 : vector<4x16xf32>, vector<28x16xf32> -> vector<32x16xf32>
    %c4_29 = arith.constant 4 : index
    %c0_30 = arith.constant 0 : index
    %c0_31 = arith.constant 0 : index
    %55 = vector.load %arg3[%c4_29, %c0_30, %c0_31] : memref<17x32x16xf32, #tpu.memory_space<vmem>>, vector<1x32x16xf32>
    %56 = vector.shape_cast %55 : vector<1x32x16xf32> to vector<32x16xf32>
    %57 = arith.mulf %54, %56 : vector<32x16xf32>
    %58 = arith.addf %51, %57 : vector<32x16xf32>
    %59 = vector.extract_strided_slice %20 {offsets = [29, 0], sizes = [3, 16], strides = [1, 1]} : vector<32x16xf32> to vector<3x16xf32>
    %60 = vector.extract_strided_slice %20 {offsets = [0, 0], sizes = [29, 16], strides = [1, 1]} : vector<32x16xf32> to vector<29x16xf32>
    %61 = tpu.concatenate %59, %60 in 0 : vector<3x16xf32>, vector<29x16xf32> -> vector<32x16xf32>
    %c5 = arith.constant 5 : index
    %c0_32 = arith.constant 0 : index
    %c0_33 = arith.constant 0 : index
    %62 = vector.load %arg3[%c5, %c0_32, %c0_33] : memref<17x32x16xf32, #tpu.memory_space<vmem>>, vector<1x32x16xf32>
    %63 = vector.shape_cast %62 : vector<1x32x16xf32> to vector<32x16xf32>
    %64 = arith.mulf %61, %63 : vector<32x16xf32>
    %65 = arith.addf %58, %64 : vector<32x16xf32>
    %66 = vector.extract_strided_slice %20 {offsets = [30, 0], sizes = [2, 16], strides = [1, 1]} : vector<32x16xf32> to vector<2x16xf32>
    %67 = vector.extract_strided_slice %20 {offsets = [0, 0], sizes = [30, 16], strides = [1, 1]} : vector<32x16xf32> to vector<30x16xf32>
    %68 = tpu.concatenate %66, %67 in 0 : vector<2x16xf32>, vector<30x16xf32> -> vector<32x16xf32>
    %c6 = arith.constant 6 : index
    %c0_34 = arith.constant 0 : index
    %c0_35 = arith.constant 0 : index
    %69 = vector.load %arg3[%c6, %c0_34, %c0_35] : memref<17x32x16xf32, #tpu.memory_space<vmem>>, vector<1x32x16xf32>
    %70 = vector.shape_cast %69 : vector<1x32x16xf32> to vector<32x16xf32>
    %71 = arith.mulf %68, %70 : vector<32x16xf32>
    %72 = arith.addf %65, %71 : vector<32x16xf32>
    %73 = vector.extract_strided_slice %20 {offsets = [31, 0], sizes = [1, 16], strides = [1, 1]} : vector<32x16xf32> to vector<1x16xf32>
    %74 = vector.extract_strided_slice %20 {offsets = [0, 0], sizes = [31, 16], strides = [1, 1]} : vector<32x16xf32> to vector<31x16xf32>
    %75 = tpu.concatenate %73, %74 in 0 : vector<1x16xf32>, vector<31x16xf32> -> vector<32x16xf32>
    %c7 = arith.constant 7 : index
    %c0_36 = arith.constant 0 : index
    %c0_37 = arith.constant 0 : index
    %76 = vector.load %arg3[%c7, %c0_36, %c0_37] : memref<17x32x16xf32, #tpu.memory_space<vmem>>, vector<1x32x16xf32>
    %77 = vector.shape_cast %76 : vector<1x32x16xf32> to vector<32x16xf32>
    %78 = arith.mulf %75, %77 : vector<32x16xf32>
    %79 = arith.addf %72, %78 : vector<32x16xf32>
    %80 = vector.extract_strided_slice %20 {offsets = [1, 0], sizes = [31, 16], strides = [1, 1]} : vector<32x16xf32> to vector<31x16xf32>
    %81 = vector.extract_strided_slice %20 {offsets = [0, 0], sizes = [1, 16], strides = [1, 1]} : vector<32x16xf32> to vector<1x16xf32>
    %82 = tpu.concatenate %80, %81 in 0 : vector<31x16xf32>, vector<1x16xf32> -> vector<32x16xf32>
    %c9 = arith.constant 9 : index
    %c0_38 = arith.constant 0 : index
    %c0_39 = arith.constant 0 : index
    %83 = vector.load %arg3[%c9, %c0_38, %c0_39] : memref<17x32x16xf32, #tpu.memory_space<vmem>>, vector<1x32x16xf32>
    %84 = vector.shape_cast %83 : vector<1x32x16xf32> to vector<32x16xf32>
    %85 = arith.mulf %82, %84 : vector<32x16xf32>
    %86 = arith.addf %79, %85 : vector<32x16xf32>
    %87 = vector.extract_strided_slice %20 {offsets = [2, 0], sizes = [30, 16], strides = [1, 1]} : vector<32x16xf32> to vector<30x16xf32>
    %88 = vector.extract_strided_slice %20 {offsets = [0, 0], sizes = [2, 16], strides = [1, 1]} : vector<32x16xf32> to vector<2x16xf32>
    %89 = tpu.concatenate %87, %88 in 0 : vector<30x16xf32>, vector<2x16xf32> -> vector<32x16xf32>
    %c10 = arith.constant 10 : index
    %c0_40 = arith.constant 0 : index
    %c0_41 = arith.constant 0 : index
    %90 = vector.load %arg3[%c10, %c0_40, %c0_41] : memref<17x32x16xf32, #tpu.memory_space<vmem>>, vector<1x32x16xf32>
    %91 = vector.shape_cast %90 : vector<1x32x16xf32> to vector<32x16xf32>
    %92 = arith.mulf %89, %91 : vector<32x16xf32>
    %93 = arith.addf %86, %92 : vector<32x16xf32>
    %94 = vector.extract_strided_slice %20 {offsets = [3, 0], sizes = [29, 16], strides = [1, 1]} : vector<32x16xf32> to vector<29x16xf32>
    %95 = vector.extract_strided_slice %20 {offsets = [0, 0], sizes = [3, 16], strides = [1, 1]} : vector<32x16xf32> to vector<3x16xf32>
    %96 = tpu.concatenate %94, %95 in 0 : vector<29x16xf32>, vector<3x16xf32> -> vector<32x16xf32>
    %c11 = arith.constant 11 : index
    %c0_42 = arith.constant 0 : index
    %c0_43 = arith.constant 0 : index
    %97 = vector.load %arg3[%c11, %c0_42, %c0_43] : memref<17x32x16xf32, #tpu.memory_space<vmem>>, vector<1x32x16xf32>
    %98 = vector.shape_cast %97 : vector<1x32x16xf32> to vector<32x16xf32>
    %99 = arith.mulf %96, %98 : vector<32x16xf32>
    %100 = arith.addf %93, %99 : vector<32x16xf32>
    %101 = vector.extract_strided_slice %20 {offsets = [4, 0], sizes = [28, 16], strides = [1, 1]} : vector<32x16xf32> to vector<28x16xf32>
    %102 = vector.extract_strided_slice %20 {offsets = [0, 0], sizes = [4, 16], strides = [1, 1]} : vector<32x16xf32> to vector<4x16xf32>
    %103 = tpu.concatenate %101, %102 in 0 : vector<28x16xf32>, vector<4x16xf32> -> vector<32x16xf32>
    %c12 = arith.constant 12 : index
    %c0_44 = arith.constant 0 : index
    %c0_45 = arith.constant 0 : index
    %104 = vector.load %arg3[%c12, %c0_44, %c0_45] : memref<17x32x16xf32, #tpu.memory_space<vmem>>, vector<1x32x16xf32>
    %105 = vector.shape_cast %104 : vector<1x32x16xf32> to vector<32x16xf32>
    %106 = arith.mulf %103, %105 : vector<32x16xf32>
    %107 = arith.addf %100, %106 : vector<32x16xf32>
    %108 = vector.extract_strided_slice %20 {offsets = [5, 0], sizes = [27, 16], strides = [1, 1]} : vector<32x16xf32> to vector<27x16xf32>
    %109 = vector.extract_strided_slice %20 {offsets = [0, 0], sizes = [5, 16], strides = [1, 1]} : vector<32x16xf32> to vector<5x16xf32>
    %110 = tpu.concatenate %108, %109 in 0 : vector<27x16xf32>, vector<5x16xf32> -> vector<32x16xf32>
    %c13 = arith.constant 13 : index
    %c0_46 = arith.constant 0 : index
    %c0_47 = arith.constant 0 : index
    %111 = vector.load %arg3[%c13, %c0_46, %c0_47] : memref<17x32x16xf32, #tpu.memory_space<vmem>>, vector<1x32x16xf32>
    %112 = vector.shape_cast %111 : vector<1x32x16xf32> to vector<32x16xf32>
    %113 = arith.mulf %110, %112 : vector<32x16xf32>
    %114 = arith.addf %107, %113 : vector<32x16xf32>
    %115 = vector.extract_strided_slice %20 {offsets = [6, 0], sizes = [26, 16], strides = [1, 1]} : vector<32x16xf32> to vector<26x16xf32>
    %116 = vector.extract_strided_slice %20 {offsets = [0, 0], sizes = [6, 16], strides = [1, 1]} : vector<32x16xf32> to vector<6x16xf32>
    %117 = tpu.concatenate %115, %116 in 0 : vector<26x16xf32>, vector<6x16xf32> -> vector<32x16xf32>
    %c14 = arith.constant 14 : index
    %c0_48 = arith.constant 0 : index
    %c0_49 = arith.constant 0 : index
    %118 = vector.load %arg3[%c14, %c0_48, %c0_49] : memref<17x32x16xf32, #tpu.memory_space<vmem>>, vector<1x32x16xf32>
    %119 = vector.shape_cast %118 : vector<1x32x16xf32> to vector<32x16xf32>
    %120 = arith.mulf %117, %119 : vector<32x16xf32>
    %121 = arith.addf %114, %120 : vector<32x16xf32>
    %122 = vector.extract_strided_slice %20 {offsets = [7, 0], sizes = [25, 16], strides = [1, 1]} : vector<32x16xf32> to vector<25x16xf32>
    %123 = vector.extract_strided_slice %20 {offsets = [0, 0], sizes = [7, 16], strides = [1, 1]} : vector<32x16xf32> to vector<7x16xf32>
    %124 = tpu.concatenate %122, %123 in 0 : vector<25x16xf32>, vector<7x16xf32> -> vector<32x16xf32>
    %c15 = arith.constant 15 : index
    %c0_50 = arith.constant 0 : index
    %c0_51 = arith.constant 0 : index
    %125 = vector.load %arg3[%c15, %c0_50, %c0_51] : memref<17x32x16xf32, #tpu.memory_space<vmem>>, vector<1x32x16xf32>
    %126 = vector.shape_cast %125 : vector<1x32x16xf32> to vector<32x16xf32>
    %127 = arith.mulf %124, %126 : vector<32x16xf32>
    %128 = arith.addf %121, %127 : vector<32x16xf32>
    %129 = vector.extract_strided_slice %20 {offsets = [8, 0], sizes = [24, 16], strides = [1, 1]} : vector<32x16xf32> to vector<24x16xf32>
    %130 = vector.extract_strided_slice %20 {offsets = [0, 0], sizes = [8, 16], strides = [1, 1]} : vector<32x16xf32> to vector<8x16xf32>
    %131 = tpu.concatenate %129, %130 in 0 : vector<24x16xf32>, vector<8x16xf32> -> vector<32x16xf32>
    %c16 = arith.constant 16 : index
    %c0_52 = arith.constant 0 : index
    %c0_53 = arith.constant 0 : index
    %132 = vector.load %arg3[%c16, %c0_52, %c0_53] : memref<17x32x16xf32, #tpu.memory_space<vmem>>, vector<1x32x16xf32>
    %133 = vector.shape_cast %132 : vector<1x32x16xf32> to vector<32x16xf32>
    %134 = arith.mulf %131, %133 : vector<32x16xf32>
    %135 = arith.addf %128, %134 : vector<32x16xf32>
    %136 = arith.truncf %135 : vector<32x16xf32> to vector<32x16xbf16>
    %c0_54 = arith.constant 0 : index
    %c0_55 = arith.constant 0 : index
    %137 = vector.load %arg4[%c0_54, %c0_55] : memref<16x16xbf16, #tpu.memory_space<vmem>>, vector<16x16xbf16>
    %cst_56 = arith.constant dense<0.000000e+00> : vector<32x16xf32>
    %138 = tpu.matmul %136, %137, %cst_56 {dimension_numbers = #tpu.dot_dimension_numbers<[1], [0], [0], [1], [0, 0, 1, 1], [], []>} : vector<32x16xbf16>, vector<16x16xbf16>, vector<32x16xf32> -> vector<32x16xf32>
    %139 = vector.broadcast %1 : vector<1x16xf32> to vector<32x16xf32>
    %140 = arith.addf %138, %139 : vector<32x16xf32>
    %cst_57 = arith.constant 0.000000e+00 : f32
    %141 = vector.broadcast %cst_57 : f32 to vector<32x16xf32>
    %142 = arith.cmpf ogt, %140, %141 : vector<32x16xf32>
    %cst_58 = arith.constant 0.000000e+00 : f32
    %143 = vector.broadcast %cst_58 : f32 to vector<32x16xf32>
    %144 = arith.minimumf %140, %143 : vector<32x16xf32>
    %145 = math.exp %144 : vector<32x16xf32>
    %cst_59 = arith.constant 1.000000e+00 : f32
    %146 = vector.broadcast %cst_59 : f32 to vector<32x16xf32>
    %147 = arith.subf %145, %146 : vector<32x16xf32>
    %148 = arith.select %142, %140, %147 : vector<32x16xi1>, vector<32x16xf32>
    %c0_60 = arith.constant 0 : index
    %c0_61 = arith.constant 0 : index
    %149 = vector.load %arg5[%c0_60, %c0_61] : memref<4x32xbf16, #tpu.memory_space<vmem>>, vector<4x32xbf16>
    %150 = arith.truncf %148 : vector<32x16xf32> to vector<32x16xbf16>
    %cst_62 = arith.constant dense<0.000000e+00> : vector<4x16xf32>
    %151 = tpu.matmul %149, %150, %cst_62 {dimension_numbers = #tpu.dot_dimension_numbers<[1], [0], [0], [1], [0, 0, 1, 1], [], []>} : vector<4x32xbf16>, vector<32x16xbf16>, vector<4x16xf32> -> vector<4x16xf32>
    %c0_63 = arith.constant 0 : index
    %c0_64 = arith.constant 0 : index
    %152 = vector.load %arg6[%c0_63, %c0_64] : memref<288x256xbf16, #tpu.memory_space<vmem>>, vector<32x256xbf16>
    %c32 = arith.constant 32 : index
    %c0_65 = arith.constant 0 : index
    %153 = vector.load %arg6[%c32, %c0_65] : memref<288x256xbf16, #tpu.memory_space<vmem>>, vector<64x256xbf16>
    %c96 = arith.constant 96 : index
    %c0_66 = arith.constant 0 : index
    %154 = vector.load %arg6[%c96, %c0_66] : memref<288x256xbf16, #tpu.memory_space<vmem>>, vector<128x256xbf16>
    %c224 = arith.constant 224 : index
    %c0_67 = arith.constant 0 : index
    %155 = vector.load %arg6[%c224, %c0_67] : memref<288x256xbf16, #tpu.memory_space<vmem>>, vector<64x256xbf16>
    %156 = vector.extract_strided_slice %151 {offsets = [0, 0], sizes = [2, 16], strides = [1, 1]} : vector<4x16xf32> to vector<2x16xf32>
    %157 = vector.extract_strided_slice %151 {offsets = [2, 0], sizes = [2, 16], strides = [1, 1]} : vector<4x16xf32> to vector<2x16xf32>
    %158 = tpu.concatenate %156, %157 in 1 : vector<2x16xf32>, vector<2x16xf32> -> vector<2x32xf32>
    %159 = tpu.concatenate %157, %156 in 1 : vector<2x16xf32>, vector<2x16xf32> -> vector<2x32xf32>
    %160 = tpu.concatenate %158, %159 in 0 : vector<2x32xf32>, vector<2x32xf32> -> vector<4x32xf32>
    %161 = arith.truncf %160 : vector<4x32xf32> to vector<4x32xbf16>
    %cst_68 = arith.constant dense<0.000000e+00> : vector<4x256xf32>
    %162 = tpu.matmul %161, %152, %cst_68 {dimension_numbers = #tpu.dot_dimension_numbers<[1], [0], [0], [1], [0, 0, 1, 1], [], []>} : vector<4x32xbf16>, vector<32x256xbf16>, vector<4x256xf32> -> vector<4x256xf32>
    %163 = vector.broadcast %2 : vector<1x256xf32> to vector<4x256xf32>
    %164 = arith.addf %162, %163 : vector<4x256xf32>
    %cst_69 = arith.constant 0.000000e+00 : f32
    %165 = vector.broadcast %cst_69 : f32 to vector<2x64xf32>
    %166 = vector.extract_strided_slice %164 {offsets = [0, 0], sizes = [2, 256], strides = [1, 1]} : vector<4x256xf32> to vector<2x256xf32>
    %167 = vector.extract_strided_slice %166 {offsets = [0, 0], sizes = [2, 192], strides = [1, 1]} : vector<2x256xf32> to vector<2x192xf32>
    %168 = arith.negf %167 : vector<2x192xf32>
    %169 = math.exp %168 : vector<2x192xf32>
    %cst_70 = arith.constant 1.000000e+00 : f32
    %170 = vector.broadcast %cst_70 : f32 to vector<2x192xf32>
    %171 = arith.addf %170, %169 : vector<2x192xf32>
    %172 = arith.divf %170, %171 : vector<2x192xf32>
    %173 = vector.extract_strided_slice %166 {offsets = [0, 192], sizes = [2, 64], strides = [1, 1]} : vector<2x256xf32> to vector<2x64xf32>
    %174 = math.tanh %173 : vector<2x64xf32>
    %175 = vector.extract_strided_slice %172 {offsets = [0, 64], sizes = [2, 64], strides = [1, 1]} : vector<2x192xf32> to vector<2x64xf32>
    %176 = arith.mulf %175, %165 : vector<2x64xf32>
    %177 = vector.extract_strided_slice %172 {offsets = [0, 0], sizes = [2, 64], strides = [1, 1]} : vector<2x192xf32> to vector<2x64xf32>
    %178 = arith.mulf %177, %174 : vector<2x64xf32>
    %179 = arith.addf %176, %178 : vector<2x64xf32>
    %180 = vector.extract_strided_slice %172 {offsets = [0, 128], sizes = [2, 64], strides = [1, 1]} : vector<2x192xf32> to vector<2x64xf32>
    %181 = math.tanh %179 : vector<2x64xf32>
    %182 = arith.mulf %180, %181 : vector<2x64xf32>
    %183 = vector.extract_strided_slice %164 {offsets = [2, 0], sizes = [2, 256], strides = [1, 1]} : vector<4x256xf32> to vector<2x256xf32>
    %184 = arith.truncf %182 : vector<2x64xf32> to vector<2x64xbf16>
    %cst_71 = arith.constant dense<0.000000e+00> : vector<2x256xf32>
    %185 = tpu.matmul %184, %153, %cst_71 {dimension_numbers = #tpu.dot_dimension_numbers<[1], [0], [0], [1], [0, 0, 1, 1], [], []>} : vector<2x64xbf16>, vector<64x256xbf16>, vector<2x256xf32> -> vector<2x256xf32>
    %186 = arith.addf %183, %185 : vector<2x256xf32>
    %187 = vector.extract_strided_slice %186 {offsets = [0, 0], sizes = [2, 192], strides = [1, 1]} : vector<2x256xf32> to vector<2x192xf32>
    %188 = arith.negf %187 : vector<2x192xf32>
    %189 = math.exp %188 : vector<2x192xf32>
    %cst_72 = arith.constant 1.000000e+00 : f32
    %190 = vector.broadcast %cst_72 : f32 to vector<2x192xf32>
    %191 = arith.addf %190, %189 : vector<2x192xf32>
    %192 = arith.divf %190, %191 : vector<2x192xf32>
    %193 = vector.extract_strided_slice %186 {offsets = [0, 192], sizes = [2, 64], strides = [1, 1]} : vector<2x256xf32> to vector<2x64xf32>
    %194 = math.tanh %193 : vector<2x64xf32>
    %195 = vector.extract_strided_slice %192 {offsets = [0, 64], sizes = [2, 64], strides = [1, 1]} : vector<2x192xf32> to vector<2x64xf32>
    %196 = arith.mulf %195, %179 : vector<2x64xf32>
    %197 = vector.extract_strided_slice %192 {offsets = [0, 0], sizes = [2, 64], strides = [1, 1]} : vector<2x192xf32> to vector<2x64xf32>
    %198 = arith.mulf %197, %194 : vector<2x64xf32>
    %199 = arith.addf %196, %198 : vector<2x64xf32>
    %200 = vector.extract_strided_slice %192 {offsets = [0, 128], sizes = [2, 64], strides = [1, 1]} : vector<2x192xf32> to vector<2x64xf32>
    %201 = math.tanh %199 : vector<2x64xf32>
    %202 = arith.mulf %200, %201 : vector<2x64xf32>
    %203 = vector.extract_strided_slice %182 {offsets = [0, 0], sizes = [2, 32], strides = [1, 1]} : vector<2x64xf32> to vector<2x32xf32>
    %204 = vector.extract_strided_slice %202 {offsets = [0, 32], sizes = [2, 32], strides = [1, 1]} : vector<2x64xf32> to vector<2x32xf32>
    %205 = tpu.concatenate %203, %204 in 1 : vector<2x32xf32>, vector<2x32xf32> -> vector<2x64xf32>
    %206 = vector.extract_strided_slice %202 {offsets = [0, 0], sizes = [2, 32], strides = [1, 1]} : vector<2x64xf32> to vector<2x32xf32>
    %207 = vector.extract_strided_slice %182 {offsets = [0, 32], sizes = [2, 32], strides = [1, 1]} : vector<2x64xf32> to vector<2x32xf32>
    %208 = tpu.concatenate %206, %207 in 1 : vector<2x32xf32>, vector<2x32xf32> -> vector<2x64xf32>
    %209 = tpu.concatenate %205, %208 in 1 : vector<2x64xf32>, vector<2x64xf32> -> vector<2x128xf32>
    %210 = tpu.concatenate %208, %205 in 1 : vector<2x64xf32>, vector<2x64xf32> -> vector<2x128xf32>
    %211 = tpu.concatenate %209, %210 in 0 : vector<2x128xf32>, vector<2x128xf32> -> vector<4x128xf32>
    %212 = arith.truncf %211 : vector<4x128xf32> to vector<4x128xbf16>
    %cst_73 = arith.constant dense<0.000000e+00> : vector<4x256xf32>
    %213 = tpu.matmul %212, %154, %cst_73 {dimension_numbers = #tpu.dot_dimension_numbers<[1], [0], [0], [1], [0, 0, 1, 1], [], []>} : vector<4x128xbf16>, vector<128x256xbf16>, vector<4x256xf32> -> vector<4x256xf32>
    %214 = vector.broadcast %3 : vector<1x256xf32> to vector<4x256xf32>
    %215 = arith.addf %213, %214 : vector<4x256xf32>
    %cst_74 = arith.constant 0.000000e+00 : f32
    %216 = vector.broadcast %cst_74 : f32 to vector<2x64xf32>
    %217 = vector.extract_strided_slice %215 {offsets = [0, 0], sizes = [2, 256], strides = [1, 1]} : vector<4x256xf32> to vector<2x256xf32>
    %218 = vector.extract_strided_slice %217 {offsets = [0, 0], sizes = [2, 192], strides = [1, 1]} : vector<2x256xf32> to vector<2x192xf32>
    %219 = arith.negf %218 : vector<2x192xf32>
    %220 = math.exp %219 : vector<2x192xf32>
    %cst_75 = arith.constant 1.000000e+00 : f32
    %221 = vector.broadcast %cst_75 : f32 to vector<2x192xf32>
    %222 = arith.addf %221, %220 : vector<2x192xf32>
    %223 = arith.divf %221, %222 : vector<2x192xf32>
    %224 = vector.extract_strided_slice %217 {offsets = [0, 192], sizes = [2, 64], strides = [1, 1]} : vector<2x256xf32> to vector<2x64xf32>
    %225 = math.tanh %224 : vector<2x64xf32>
    %226 = vector.extract_strided_slice %223 {offsets = [0, 64], sizes = [2, 64], strides = [1, 1]} : vector<2x192xf32> to vector<2x64xf32>
    %227 = arith.mulf %226, %216 : vector<2x64xf32>
    %228 = vector.extract_strided_slice %223 {offsets = [0, 0], sizes = [2, 64], strides = [1, 1]} : vector<2x192xf32> to vector<2x64xf32>
    %229 = arith.mulf %228, %225 : vector<2x64xf32>
    %230 = arith.addf %227, %229 : vector<2x64xf32>
    %231 = vector.extract_strided_slice %223 {offsets = [0, 128], sizes = [2, 64], strides = [1, 1]} : vector<2x192xf32> to vector<2x64xf32>
    %232 = math.tanh %230 : vector<2x64xf32>
    %233 = arith.mulf %231, %232 : vector<2x64xf32>
    %234 = vector.extract_strided_slice %215 {offsets = [2, 0], sizes = [2, 256], strides = [1, 1]} : vector<4x256xf32> to vector<2x256xf32>
    %235 = arith.truncf %233 : vector<2x64xf32> to vector<2x64xbf16>
    %cst_76 = arith.constant dense<0.000000e+00> : vector<2x256xf32>
    %236 = tpu.matmul %235, %155, %cst_76 {dimension_numbers = #tpu.dot_dimension_numbers<[1], [0], [0], [1], [0, 0, 1, 1], [], []>} : vector<2x64xbf16>, vector<64x256xbf16>, vector<2x256xf32> -> vector<2x256xf32>
    %237 = arith.addf %234, %236 : vector<2x256xf32>
    %238 = vector.extract_strided_slice %237 {offsets = [0, 0], sizes = [2, 192], strides = [1, 1]} : vector<2x256xf32> to vector<2x192xf32>
    %239 = arith.negf %238 : vector<2x192xf32>
    %240 = math.exp %239 : vector<2x192xf32>
    %cst_77 = arith.constant 1.000000e+00 : f32
    %241 = vector.broadcast %cst_77 : f32 to vector<2x192xf32>
    %242 = arith.addf %241, %240 : vector<2x192xf32>
    %243 = arith.divf %241, %242 : vector<2x192xf32>
    %244 = vector.extract_strided_slice %237 {offsets = [0, 192], sizes = [2, 64], strides = [1, 1]} : vector<2x256xf32> to vector<2x64xf32>
    %245 = math.tanh %244 : vector<2x64xf32>
    %246 = vector.extract_strided_slice %243 {offsets = [0, 64], sizes = [2, 64], strides = [1, 1]} : vector<2x192xf32> to vector<2x64xf32>
    %247 = arith.mulf %246, %230 : vector<2x64xf32>
    %248 = vector.extract_strided_slice %243 {offsets = [0, 0], sizes = [2, 64], strides = [1, 1]} : vector<2x192xf32> to vector<2x64xf32>
    %249 = arith.mulf %248, %245 : vector<2x64xf32>
    %250 = arith.addf %247, %249 : vector<2x64xf32>
    %251 = vector.extract_strided_slice %243 {offsets = [0, 128], sizes = [2, 64], strides = [1, 1]} : vector<2x192xf32> to vector<2x64xf32>
    %252 = math.tanh %250 : vector<2x64xf32>
    %253 = arith.mulf %251, %252 : vector<2x64xf32>
    %254 = vector.extract_strided_slice %253 {offsets = [0, 0], sizes = [2, 32], strides = [1, 1]} : vector<2x64xf32> to vector<2x32xf32>
    %255 = vector.extract_strided_slice %233 {offsets = [0, 32], sizes = [2, 32], strides = [1, 1]} : vector<2x64xf32> to vector<2x32xf32>
    %256 = tpu.concatenate %254, %255 in 1 : vector<2x32xf32>, vector<2x32xf32> -> vector<2x64xf32>
    %257 = arith.truncf %256 : vector<2x64xf32> to vector<2x64xbf16>
    %c0_78 = arith.constant 0 : index
    %c0_79 = arith.constant 0 : index
    %258 = vector.load %arg7[%c0_78, %c0_79] : memref<64x128xbf16, #tpu.memory_space<vmem>>, vector<64x128xbf16>
    %cst_80 = arith.constant dense<0.000000e+00> : vector<2x128xf32>
    %259 = tpu.matmul %257, %258, %cst_80 {dimension_numbers = #tpu.dot_dimension_numbers<[1], [0], [0], [1], [0, 0, 1, 1], [], []>} : vector<2x64xbf16>, vector<64x128xbf16>, vector<2x128xf32> -> vector<2x128xf32>
    %260 = vector.broadcast %4 : vector<1x128xf32> to vector<2x128xf32>
    %261 = arith.addf %259, %260 : vector<2x128xf32>
    %cst_81 = arith.constant dense<0xFF800000> : vector<2xf32>
    %262 = vector.multi_reduction <maximumf>, %261, %cst_81 [1] : vector<2x128xf32> to vector<2xf32>
    %263 = vector.shape_cast %262 : vector<2xf32> to vector<2x1xf32>
    %264 = vector.broadcast %263 : vector<2x1xf32> to vector<2x128xf32>
    %265 = arith.subf %261, %264 : vector<2x128xf32>
    %266 = math.exp %265 : vector<2x128xf32>
    %cst_82 = arith.constant dense<0.000000e+00> : vector<2xf32>
    %267 = vector.multi_reduction <add>, %266, %cst_82 [1] : vector<2x128xf32> to vector<2xf32>
    %268 = vector.shape_cast %267 : vector<2xf32> to vector<2x1xf32>
    %269 = math.log %268 : vector<2x1xf32>
    %270 = vector.broadcast %269 : vector<2x1xf32> to vector<2x128xf32>
    %271 = arith.subf %265, %270 : vector<2x128xf32>
    %c0_83 = arith.constant 0 : index
    %c0_84 = arith.constant 0 : index
    %272 = vector.load %arg9[%c0_83, %c0_84] : memref<2x128xf32, #tpu.memory_space<vmem>>, vector<2x128xf32>
    tpu.vector_store %arg9[%c0_83, %c0_84], %271 {strides = array<i32>} : memref<2x128xf32, #tpu.memory_space<vmem>>, vector<2x128xf32>,
    return
  }
}

</mosaic_0001>

<llo_original>
// kernel: eegnet_lstm_forward.1
$region0: #{eegnet_lstm_forward.1}
  #allocation0 [shape = 'u32[]', space=smem, size = 0x4, offset = 0x4, fixed_abs, tag = 'smem constant byte address 0x4 - core index']
  #allocation1 [shape = 'u32[144,128]{1,0:T(1,128)}', space=vmem, size = 0x12000, scoped, tag = 'internal scratch']
  %s0 = inlined_call_operand.vmem [shape: bf16[128,144], index: 0, kind: input, shape index: {}]
  %s1 = inlined_call_operand.vmem [shape: bf16[144,16], index: 1, kind: input, shape index: {}]
  %s2 = inlined_call_operand.vmem [shape: bf16[32,128], index: 2, kind: input, shape index: {}]
  %s3 = inlined_call_operand.vmem [shape: f32[17,32,16], index: 3, kind: input, shape index: {}]
  %s4 = inlined_call_operand.vmem [shape: bf16[16,16], index: 4, kind: input, shape index: {}]
  %s5 = inlined_call_operand.vmem [shape: bf16[4,32], index: 5, kind: input, shape index: {}]
  %s6 = inlined_call_operand.vmem [shape: bf16[288,256], index: 6, kind: input, shape index: {}]
  %s7 = inlined_call_operand.vmem [shape: bf16[64,128], index: 7, kind: input, shape index: {}]
  %s8 = inlined_call_operand.vmem [shape: f32[8,256], index: 8, kind: input, shape index: {}]
  %s9 = inlined_call_operand.hbm [shape: f32[2,128], index: 9, kind: output, shape index: {}]
  %s10 = sld [smem:[#allocation0]]
  $region46: #{eegnet_lstm_forward.1} parent=0
    _
  %s12 = ssub.s32 1, %s10
  %s13 = scalar_select 0, %s12, %s10
  $region1: #{eegnet_lstm_forward.1} parent=0
    #allocation2 [shape = 'u8[1024]{0}', space=vmem, size = 0x400, scoped, tag = 'output window, operand 0, single buffered']
    #allocation3 [shape = 's32[1]{0}', space=sflag, size = 0x4, scoped, tag = 'scoped memory for eegnet_lstm_forward.1']
    %14 = vsyncpa [#allocation3], 0
    // Predicated region
    $region2: #{eegnet_lstm_forward.1} parent=1 // pred_check
      _
    $region3: #{eegnet_lstm_forward.1} parent=1 // pred_check_branch
      %16 = sbr.rel (0) target = $region5
    $region4: #{eegnet_lstm_forward.1} parent=1 // pred_region
      _
    $region5: #{eegnet_lstm_forward.1} parent=1 // pred_fallthru
      _
    // Predicated region
    $region6: #{eegnet_lstm_forward.1} parent=1 // pred_check
      _
    $region7: #{eegnet_lstm_forward.1} parent=1 // pred_check_branch
      %18 = sbr.rel (0) target = $region9
    $region8: #{eegnet_lstm_forward.1} parent=1 // pred_region
      _
    $region9: #{eegnet_lstm_forward.1} parent=1 // pred_fallthru
      _
    // Predicated region
    $region10: #{eegnet_lstm_forward.1} parent=1 // pred_check
      _
    $region11: #{eegnet_lstm_forward.1} parent=1 // pred_check_branch
      %20 = sbr.rel (0) target = $region13
    $region12: #{eegnet_lstm_forward.1} parent=1 // pred_region
      _
    $region13: #{eegnet_lstm_forward.1} parent=1 // pred_fallthru
      _
    // Predicated region
    $region14: #{eegnet_lstm_forward.1} parent=1 // pred_check
      _
    $region15: #{eegnet_lstm_forward.1} parent=1 // pred_check_branch
      %22 = sbr.rel (0) target = $region17
    $region16: #{eegnet_lstm_forward.1} parent=1 // pred_region
      _
    $region17: #{eegnet_lstm_forward.1} parent=1 // pred_fallthru
      _
    // Predicated region
    $region18: #{eegnet_lstm_forward.1} parent=1 // pred_check
      _
    $region19: #{eegnet_lstm_forward.1} parent=1 // pred_check_branch
      %24 = sbr.rel (0) target = $region21
    $region20: #{eegnet_lstm_forward.1} parent=1 // pred_region
      _
    $region21: #{eegnet_lstm_forward.1} parent=1 // pred_fallthru
      _
    // Predicated region
    $region22: #{eegnet_lstm_forward.1} parent=1 // pred_check
      _
    $region23: #{eegnet_lstm_forward.1} parent=1 // pred_check_branch
      %26 = sbr.rel (0) target = $region25
    $region24: #{eegnet_lstm_forward.1} parent=1 // pred_region
      _
    $region25: #{eegnet_lstm_forward.1} parent=1 // pred_fallthru
      _
    // Predicated region
    $region26: #{eegnet_lstm_forward.1} parent=1 // pred_check
      _
    $region27: #{eegnet_lstm_forward.1} parent=1 // pred_check_branch
      %28 = sbr.rel (0) target = $region29
    $region28: #{eegnet_lstm_forward.1} parent=1 // pred_region
      _
    $region29: #{eegnet_lstm_forward.1} parent=1 // pred_fallthru
      _
    // Predicated region
    $region30: #{eegnet_lstm_forward.1} parent=1 // pred_check
      _
    $region31: #{eegnet_lstm_forward.1} parent=1 // pred_check_branch
      %30 = sbr.rel (0) target = $region33
    $region32: #{eegnet_lstm_forward.1} parent=1 // pred_region
      _
    $region33: #{eegnet_lstm_forward.1} parent=1 // pred_fallthru
      _
    // Predicated region
    $region34: #{eegnet_lstm_forward.1} parent=1 // pred_check
      _
    $region35: #{eegnet_lstm_forward.1} parent=1 // pred_check_branch
      %32 = sbr.rel (0) target = $region37
    $region36: #{eegnet_lstm_forward.1} parent=1 // pred_region
      _
    $region37: #{eegnet_lstm_forward.1} parent=1 // pred_fallthru
      _
    %v34 = vld [vmem:[%s8] ss:$0 sm:$0xff]
    %v35 = vld [vmem:[%s8 + $0x1] ss:$0 sm:$0xff]
    %s36 = scalar_lea.vmem %s8, 2
    %v37 = vld [vmem:[%s36] ss:$8 sm:$0x3]
    %s38 = scalar_lea.vmem %s8, 3
    %v39 = vld [vmem:[%s38] ss:$8 sm:$0x3]
    %v40 = vld [vmem:[%s8 + $0x4] ss:$0 sm:$0xff]
    %v41 = vld [vmem:[%s0] sm:$0xff]
    %v42 = vld [vmem:[%s0 + $0x8] sm:$0xff]
    %v43 = vld [vmem:[%s0 + $0x10] sm:$0xff]
    %v44 = vld [vmem:[%s0 + $0x18] sm:$0xff]
    %v45 = vld [vmem:[%s0 + $0x20] sm:$0xff]
    %v46 = vld [vmem:[%s0 + $0x28] sm:$0xff]
    %v47 = vld [vmem:[%s0 + $0x30] sm:$0xff]
    %v48 = vld [vmem:[%s0 + $0x38] sm:$0xff]
    %v49 = vld [vmem:[%s0 + $0x40] sm:$0xff]
    %v50 = vld [vmem:[%s0 + $0x48] sm:$0xff]
    %v51 = vld [vmem:[%s0 + $0x50] sm:$0xff]
    %v52 = vld [vmem:[%s0 + $0x58] sm:$0xff]
    %v53 = vld [vmem:[%s0 + $0x60] sm:$0xff]
    %v54 = vld [vmem:[%s0 + $0x68] sm:$0xff]
    %v55 = vld [vmem:[%s0 + $0x70] sm:$0xff]
    %v56 = vld [vmem:[%s0 + $0x78] sm:$0xff]
    %v57 = vld [vmem:[%s1] sm:$0xf]
    %v58 = vld [vmem:[%s1 + $0x4] sm:$0xf]
    %v59 = vld [vmem:[%s1 + $0x8] sm:$0xf]
    %v60 = vld [vmem:[%s1 + $0xc] sm:$0xf]
    %v61 = vld [vmem:[%s1 + $0x10] sm:$0xf]
    %v62 = vld [vmem:[%s1 + $0x14] sm:$0xf]
    %v63 = vld [vmem:[%s1 + $0x18] sm:$0xf]
    %v64 = vld [vmem:[%s1 + $0x1c] sm:$0xf]
    %v65 = vld [vmem:[%s1 + $0x20] sm:$0xf]
    %v66 = vld [vmem:[%s1 + $0x24] sm:$0xf]
    %v67 = vld [vmem:[%s1 + $0x28] sm:$0xf]
    %v68 = vld [vmem:[%s1 + $0x2c] sm:$0xf]
    %v69 = vld [vmem:[%s1 + $0x30] sm:$0xf]
    %v70 = vld [vmem:[%s1 + $0x34] sm:$0xf]
    %v71 = vld [vmem:[%s1 + $0x38] sm:$0xf]
    %v72 = vld [vmem:[%s1 + $0x3c] sm:$0xf]
    %v73 = vld [vmem:[%s1 + $0x40] sm:$0xf]
    %v74 = vld [vmem:[%s1 + $0x44] sm:$0xf]
    %v91 = vunpack.c.l.b16 %v41
    %v92 = vunpack.c.h.b16 %v41
    %v93 = vunpack.c.l.b16 %v42
    %v94 = vunpack.c.h.b16 %v42
    %v95 = vunpack.c.l.b16 %v43
    %v96 = vunpack.c.h.b16 %v43
    %v97 = vunpack.c.l.b16 %v44
    %v98 = vunpack.c.h.b16 %v44
    %v99 = vunpack.c.l.b16 %v45
    %v100 = vunpack.c.h.b16 %v45
    %v101 = vunpack.c.l.b16 %v46
    %v102 = vunpack.c.h.b16 %v46
    %v103 = vunpack.c.l.b16 %v47
    %v104 = vunpack.c.h.b16 %v47
    %v105 = vunpack.c.l.b16 %v48
    %v106 = vunpack.c.h.b16 %v48
    %v107 = vunpack.c.l.b16 %v49
    %v108 = vunpack.c.h.b16 %v49
    %v109 = vunpack.c.l.b16 %v50
    %v110 = vunpack.c.h.b16 %v50
    %v111 = vunpack.c.l.b16 %v51
    %v112 = vunpack.c.h.b16 %v51
    %v113 = vunpack.c.l.b16 %v52
    %v114 = vunpack.c.h.b16 %v52
    %v115 = vunpack.c.l.b16 %v53
    %v116 = vunpack.c.h.b16 %v53
    %v117 = vunpack.c.l.b16 %v54
    %v118 = vunpack.c.h.b16 %v54
    %v119 = vunpack.c.l.b16 %v55
    %v120 = vunpack.c.h.b16 %v55
    %v121 = vunpack.c.l.b16 %v56
    %v122 = vunpack.c.h.b16 %v56
    %v123 = vpack.c.b16 %v93, %v91
    %v124 = vpack.c.b16 %v94, %v92
    %v125 = vpack.c.b16 %v97, %v95
    %v126 = vpack.c.b16 %v98, %v96
    %v127 = vpack.c.b16 %v101, %v99
    %v128 = vpack.c.b16 %v102, %v100
    %v129 = vpack.c.b16 %v105, %v103
    %v130 = vpack.c.b16 %v106, %v104
    %v131 = vpack.c.b16 %v109, %v107
    %v132 = vpack.c.b16 %v110, %v108
    %v133 = vpack.c.b16 %v113, %v111
    %v134 = vpack.c.b16 %v114, %v112
    %v135 = vpack.c.b16 %v117, %v115
    %v136 = vpack.c.b16 %v118, %v116
    %v137 = vpack.c.b16 %v121, %v119
    %v138 = vpack.c.b16 %v122, %v120
    %v165 = vunpack.c.l.b16 %v57
    %v166 = vunpack.c.l.b16 %v58
    %v167 = vunpack.c.l.b16 %v59
    %v168 = vunpack.c.l.b16 %v60
    %v169 = vunpack.c.l.b16 %v61
    %v170 = vunpack.c.l.b16 %v62
    %v171 = vunpack.c.l.b16 %v63
    %v172 = vunpack.c.l.b16 %v64
    %v173 = vunpack.c.l.b16 %v65
    %v174 = vunpack.c.l.b16 %v66
    %v175 = vunpack.c.l.b16 %v67
    %v176 = vunpack.c.l.b16 %v68
    %v177 = vunpack.c.l.b16 %v69
    %v178 = vunpack.c.l.b16 %v70
    %v179 = vunpack.c.l.b16 %v71
    %v180 = vunpack.c.l.b16 %v72
    %v181 = vunpack.c.l.b16 %v73
    %v182 = vunpack.c.l.b16 %v74
    %v183 = vpack.c.b16 %v166, %v165
    %v184 = vpack.c.b16 %v168, %v167
    %v185 = vpack.c.b16 %v170, %v169
    %v186 = vpack.c.b16 %v172, %v171
    %v187 = vpack.c.b16 %v174, %v173
    %v188 = vpack.c.b16 %v176, %v175
    %v189 = vpack.c.b16 %v178, %v177
    %v190 = vpack.c.b16 %v180, %v179
    %v191 = vpack.c.b16 %v182, %v181
    %vm201 = vcmask 130048
    %v203 = vsel %vm201, %v124, 0
    %v206 = vsel %vm201, %v126, 0
    %v209 = vsel %vm201, %v128, 0
    %v212 = vsel %vm201, %v130, 0
    %v215 = vsel %vm201, %v132, 0
    %v218 = vsel %vm201, %v134, 0
    %v221 = vsel %vm201, %v136, 0
    %v224 = vsel %vm201, %v138, 0
    %226 = vmatprep.subr.bf16.mxu0 0
    %227 = vmatpush1.bf16.msra.mxu0 %v190
    %228 = vmatprep.subr.bf16.mxu0 0
    %229 = vmatpush1.bf16.msra.mxu0 %v189
    %230 = vmatprep.subr.bf16.mxu0 0
    %231 = vmatpush1.bf16.msra.mxu0 %v188
    %232 = vmatprep.subr.bf16.mxu0 0
    %233 = vmatpush1.bf16.msra.mxu0 %v187
    %234 = vmatprep.subr.bf16.mxu0 0
    %235 = vmatpush1.bf16.msra.mxu0 %v186
    %236 = vmatprep.subr.bf16.mxu0 0
    %237 = vmatpush1.bf16.msra.mxu0 %v185
    %238 = vmatprep.subr.bf16.mxu0 0
    %239 = vmatpush1.bf16.msra.mxu0 %v184
    %240 = vmatprep.subr.bf16.mxu0 0
    %241 = vmatpush1.bf16.msra.mxu0 %v183
    %242 = vmatprep.subr.bf16.mxu0 0
    %243 = vmatpush2.bf16.msra.mxu0 0
    %244 = vmatprep.subr.bf16.mxu0 0
    %245 = vmatpush2.bf16.msra.mxu0 0
    %246 = vmatprep.subr.bf16.mxu0 0
    %247 = vmatpush2.bf16.msra.mxu0 0
    %248 = vmatprep.subr.bf16.mxu0 0
    %249 = vmatpush2.bf16.msra.mxu0 0
    %250 = vmatprep.subr.bf16.mxu0 0
    %251 = vmatpush2.bf16.msra.mxu0 0
    %252 = vmatprep.subr.bf16.mxu0 0
    %253 = vmatpush2.bf16.msra.mxu0 0
    %254 = vmatprep.subr.bf16.mxu0 0
    %255 = vmatpush2.bf16.msra.mxu0 0
    %256 = vmatprep.subr.bf16.mxu0 0
    %257 = vmatpush2.bf16.msra.mxu0 %v191
    %258 = vmatprep.mubr.bf16.mxu0 %v203
    %259 = vmatmul.mubr.bf16.gmra.mxu0 %v123
    %v260 = vpop.f32.mrf.mxu0
    %v261 = vadd.f32 %v34, %v260
    %v262 = vpop.f32.mrf.mxu0
    %v263 = vpop.f32.mrf.mxu0
    %v264 = vadd.f32 %v34, %v263
    %v265 = vpop.f32.mrf.mxu0
    %266 = vmatprep.mubr.bf16.mxu0 %v206
    %267 = vmatmul.mubr.bf16.gmra.mxu0 %v125
    %v268 = vpop.f32.mrf.mxu0
    %v269 = vadd.f32 %v34, %v268
    %v270 = vpop.f32.mrf.mxu0
    %v271 = vpop.f32.mrf.mxu0
    %v272 = vadd.f32 %v34, %v271
    %v273 = vpop.f32.mrf.mxu0
    %274 = vmatprep.mubr.bf16.mxu0 %v209
    %275 = vmatmul.mubr.bf16.gmra.mxu0 %v127
    %v276 = vpop.f32.mrf.mxu0
    %v277 = vadd.f32 %v34, %v276
    %v278 = vpop.f32.mrf.mxu0
    %v279 = vpop.f32.mrf.mxu0
    %v280 = vadd.f32 %v34, %v279
    %v281 = vpop.f32.mrf.mxu0
    %282 = vmatprep.mubr.bf16.mxu0 %v212
    %283 = vmatmul.mubr.bf16.gmra.mxu0 %v129
    %v284 = vpop.f32.mrf.mxu0
    %v285 = vadd.f32 %v34, %v284
    %v286 = vpop.f32.mrf.mxu0
    %v287 = vpop.f32.mrf.mxu0
    %v288 = vadd.f32 %v34, %v287
    %v289 = vpop.f32.mrf.mxu0
    %290 = vmatprep.mubr.bf16.mxu0 %v215
    %291 = vmatmul.mubr.bf16.gmra.mxu0 %v131
    %v292 = vpop.f32.mrf.mxu0
    %v293 = vadd.f32 %v34, %v292
    %v294 = vpop.f32.mrf.mxu0
    %v295 = vpop.f32.mrf.mxu0
    %v296 = vadd.f32 %v34, %v295
    %v297 = vpop.f32.mrf.mxu0
    %298 = vmatprep.mubr.bf16.mxu0 %v218
    %299 = vmatmul.mubr.bf16.gmra.mxu0 %v133
    %v300 = vpop.f32.mrf.mxu0
    %v301 = vadd.f32 %v34, %v300
    %v302 = vpop.f32.mrf.mxu0
    %v303 = vpop.f32.mrf.mxu0
    %v304 = vadd.f32 %v34, %v303
    %v305 = vpop.f32.mrf.mxu0
    %306 = vmatprep.mubr.bf16.mxu0 %v221
    %307 = vmatmul.mubr.bf16.gmra.mxu0 %v135
    %v308 = vpop.f32.mrf.mxu0
    %v309 = vadd.f32 %v34, %v308
    %v310 = vpop.f32.mrf.mxu0
    %v311 = vpop.f32.mrf.mxu0
    %v312 = vadd.f32 %v34, %v311
    %v313 = vpop.f32.mrf.mxu0
    %314 = vmatprep.mubr.bf16.mxu0 %v224
    %315 = vmatmul.mubr.bf16.gmra.mxu0 %v137
    %v316 = vpop.f32.mrf.mxu0
    %v317 = vadd.f32 %v34, %v316
    %v318 = vpop.f32.mrf.mxu0
    %v319 = vpop.f32.mrf.mxu0
    %v320 = vadd.f32 %v34, %v319
    %v321 = vpop.f32.mrf.mxu0
    %322 = vdwg.mxu0
    %vm323 = vcmp.gt.f32.partialorder %v261, 0.0
    %vm324 = vcmp.gt.f32.partialorder %v264, 0.0
    %vm325 = vcmp.gt.f32.partialorder %v269, 0.0
    %vm326 = vcmp.gt.f32.partialorder %v272, 0.0
    %vm327 = vcmp.gt.f32.partialorder %v277, 0.0
    %vm328 = vcmp.gt.f32.partialorder %v280, 0.0
    %vm329 = vcmp.gt.f32.partialorder %v285, 0.0
    %vm330 = vcmp.gt.f32.partialorder %v288, 0.0
    %vm331 = vcmp.gt.f32.partialorder %v293, 0.0
    %vm332 = vcmp.gt.f32.partialorder %v296, 0.0
    %vm333 = vcmp.gt.f32.partialorder %v301, 0.0
    %vm334 = vcmp.gt.f32.partialorder %v304, 0.0
    %vm335 = vcmp.gt.f32.partialorder %v309, 0.0
    %vm336 = vcmp.gt.f32.partialorder %v312, 0.0
    %vm337 = vcmp.gt.f32.partialorder %v317, 0.0
    %vm338 = vcmp.gt.f32.partialorder %v320, 0.0
    %v339 = vmin.f32 %v261, 0.0
    %v340 = vmin.f32 %v264, 0.0
    %v341 = vmin.f32 %v269, 0.0
    %v342 = vmin.f32 %v272, 0.0
    %v343 = vmin.f32 %v277, 0.0
    %v344 = vmin.f32 %v280, 0.0
    %v345 = vmin.f32 %v285, 0.0
    %v346 = vmin.f32 %v288, 0.0
    %v347 = vmin.f32 %v293, 0.0
    %v348 = vmin.f32 %v296, 0.0
    %v349 = vmin.f32 %v301, 0.0
    %v350 = vmin.f32 %v304, 0.0
    %v351 = vmin.f32 %v309, 0.0
    %v352 = vmin.f32 %v312, 0.0
    %v353 = vmin.f32 %v317, 0.0
    %v354 = vmin.f32 %v320, 0.0
    %v355 = vmul.f32 %v339, 1.442695
    %v356 = vpow.pop %v355
    %v357 = vmul.f32 %v340, 1.442695
    %v358 = vpow.pop %v357
    %v359 = vmul.f32 %v341, 1.442695
    %v360 = vpow.pop %v359
    %v361 = vmul.f32 %v342, 1.442695
    %v362 = vpow.pop %v361
    %v363 = vmul.f32 %v343, 1.442695
    %v364 = vpow.pop %v363
    %v365 = vmul.f32 %v344, 1.442695
    %v366 = vpow.pop %v365
    %v367 = vmul.f32 %v345, 1.442695
    %v368 = vpow.pop %v367
    %v369 = vmul.f32 %v346, 1.442695
    %v370 = vpow.pop %v369
    %v371 = vmul.f32 %v347, 1.442695
    %v372 = vpow.pop %v371
    %v373 = vmul.f32 %v348, 1.442695
    %v374 = vpow.pop %v373
    %v375 = vmul.f32 %v349, 1.442695
    %v376 = vpow.pop %v375
    %v377 = vmul.f32 %v350, 1.442695
    %v378 = vpow.pop %v377
    %v379 = vmul.f32 %v351, 1.442695
    %v380 = vpow.pop %v379
    %v381 = vmul.f32 %v352, 1.442695
    %v382 = vpow.pop %v381
    %v383 = vmul.f32 %v353, 1.442695
    %v384 = vpow.pop %v383
    %v385 = vmul.f32 %v354, 1.442695
    %v386 = vpow.pop %v385
    %v387 = vsub.f32 %v356, 1.0
    %v388 = vsub.f32 %v358, 1.0
    %v389 = vsub.f32 %v360, 1.0
    %v390 = vsub.f32 %v362, 1.0
    %v391 = vsub.f32 %v364, 1.0
    %v392 = vsub.f32 %v366, 1.0
    %v393 = vsub.f32 %v368, 1.0
    %v394 = vsub.f32 %v370, 1.0
    %v395 = vsub.f32 %v372, 1.0
    %v396 = vsub.f32 %v374, 1.0
    %v397 = vsub.f32 %v376, 1.0
    %v398 = vsub.f32 %v378, 1.0
    %v399 = vsub.f32 %v380, 1.0
    %v400 = vsub.f32 %v382, 1.0
    %v401 = vsub.f32 %v384, 1.0
    %v402 = vsub.f32 %v386, 1.0
    %v403 = vsel %vm323, %v261, %v387
    %v404 = vsel %vm324, %v264, %v388
    %v405 = vsel %vm325, %v269, %v389
    %v406 = vsel %vm326, %v272, %v390
    %v407 = vsel %vm327, %v277, %v391
    %v408 = vsel %vm328, %v280, %v392
    %v409 = vsel %vm329, %v285, %v393
    %v410 = vsel %vm330, %v288, %v394
    %v411 = vsel %vm331, %v293, %v395
    %v412 = vsel %vm332, %v296, %v396
    %v413 = vsel %vm333, %v301, %v397
    %v414 = vsel %vm334, %v304, %v398
    %v415 = vsel %vm335, %v309, %v399
    %v416 = vsel %vm336, %v312, %v400
    %v417 = vsel %vm337, %v317, %v401
    %v418 = vsel %vm338, %v320, %v402
    %v419 = vld [vmem:[%s2] sm:$0xf]
    %v420 = vld [vmem:[%s2 + $0x4] sm:$0xf]
    %v421 = vld [vmem:[%s2 + $0x8] sm:$0xf]
    %v422 = vld [vmem:[%s2 + $0xc] sm:$0xf]
    %v423 = vpack.c.bf16 %v404, %v403
    %v424 = vpack.c.bf16 %v406, %v405
    %v425 = vpack.c.bf16 %v408, %v407
    %v426 = vpack.c.bf16 %v410, %v409
    %v427 = vpack.c.bf16 %v412, %v411
    %v428 = vpack.c.bf16 %v414, %v413
    %v429 = vpack.c.bf16 %v416, %v415
    %v430 = vpack.c.bf16 %v418, %v417
    %v435 = vunpack.c.l.b16 %v419
    %v436 = vunpack.c.l.b16 %v420
    %v437 = vunpack.c.l.b16 %v421
    %v438 = vunpack.c.l.b16 %v422
    %v439 = vpack.c.b16 %v436, %v435
    %v440 = vpack.c.b16 %v438, %v437
    %443 = vmatprep.subr.bf16.mxu0 0
    %444 = vmatpush1.bf16.msra.mxu0 %v430
    %445 = vmatprep.subr.bf16.mxu0 0
    %446 = vmatpush1.bf16.msra.mxu0 %v429
    %447 = vmatprep.subr.bf16.mxu0 0
    %448 = vmatpush1.bf16.msra.mxu0 %v428
    %449 = vmatprep.subr.bf16.mxu0 0
    %450 = vmatpush1.bf16.msra.mxu0 %v427
    %451 = vmatprep.subr.bf16.mxu0 0
    %452 = vmatpush1.bf16.msra.mxu0 %v426
    %453 = vmatprep.subr.bf16.mxu0 0
    %454 = vmatpush1.bf16.msra.mxu0 %v425
    %455 = vmatprep.subr.bf16.mxu0 0
    %456 = vmatpush1.bf16.msra.mxu0 %v424
    %457 = vmatprep.subr.bf16.mxu0 0
    %458 = vmatpush1.bf16.msra.mxu0 %v423
    %459 = vmatprep.subr.bf16.mxu0 0
    %460 = vmatpush2.bf16.msra.mxu0 0
    %461 = vmatprep.subr.bf16.mxu0 0
    %462 = vmatpush2.bf16.msra.mxu0 0
    %463 = vmatprep.subr.bf16.mxu0 0
    %464 = vmatpush2.bf16.msra.mxu0 0
    %465 = vmatprep.subr.bf16.mxu0 0
    %466 = vmatpush2.bf16.msra.mxu0 0
    %467 = vmatprep.subr.bf16.mxu0 0
    %468 = vmatpush2.bf16.msra.mxu0 0
    %469 = vmatprep.subr.bf16.mxu0 0
    %470 = vmatpush2.bf16.msra.mxu0 0
    %471 = vmatprep.subr.bf16.mxu0 0
    %472 = vmatpush2.bf16.msra.mxu0 0
    %473 = vmatprep.subr.bf16.mxu0 0
    %474 = vmatpush2.bf16.msra.mxu0 0
    %475 = vmatprep.mubr.bf16.mxu0 0
    %476 = vmatmul.mubr.bf16.gmra.mxu0 %v439
    %v477 = vpop.f32.mrf.mxu0
    %v478 = vadd.f32 0.0, %v477
    %v479 = vpop.f32.mrf.mxu0
    %v480 = vpop.f32.mrf.mxu0
    %v481 = vadd.f32 0.0, %v480
    %v482 = vpop.f32.mrf.mxu0
    %483 = vmatprep.mubr.bf16.mxu0 0
    %484 = vmatmul.mubr.bf16.gmra.mxu0 %v440
    %v485 = vpop.f32.mrf.mxu0
    %v486 = vadd.f32 0.0, %v485
    %v487 = vpop.f32.mrf.mxu0
    %v488 = vpop.f32.mrf.mxu0
    %v489 = vadd.f32 0.0, %v488
    %v490 = vpop.f32.mrf.mxu0
    %491 = vdwg.mxu0
    %s492 = scalar_lea.vmem %s3, 256
    %v493 = vld [vmem:[%s492] sm:$0xff]
    %v494 = vld [vmem:[%s492 + $0x8] sm:$0xff]
    %v495 = vld [vmem:[%s492 + $0x10] sm:$0xff]
    %v496 = vld [vmem:[%s492 + $0x18] sm:$0xff]
    %v497 = vmul.f32 %v478, %v493
    %v498 = vmul.f32 %v481, %v494
    %v499 = vmul.f32 %v486, %v495
    %v500 = vmul.f32 %v489, %v496
    %v501 = vld [vmem:[%s3] sm:$0xff]
    %v502 = vld [vmem:[%s3 + $0x8] sm:$0xff]
    %v503 = vld [vmem:[%s3 + $0x10] sm:$0xff]
    %v504 = vld [vmem:[%s3 + $0x18] sm:$0xff]
    %v505 = vmul.f32 %v489, %v501
    %v506 = vmul.f32 %v478, %v502
    %v507 = vmul.f32 %v481, %v503
    %v508 = vmul.f32 %v486, %v504
    %v509 = vadd.f32 %v497, %v505
    %v510 = vadd.f32 %v498, %v506
    %v511 = vadd.f32 %v499, %v507
    %v512 = vadd.f32 %v500, %v508
    %v514 = vrot.slane %v489, 1
    %vm519 = vcmask 1046528
    %v520 = vrot.slane %v478, 1
    %v521 = vrot.slane %v481, 1
    %v522 = vsel %vm519, %v520, %v521
    %v523 = vrot.slane %v486, 1
    %v524 = vsel %vm519, %v521, %v523
    %v525 = vsel %vm519, %v523, %v514
    %v530 = vsel %vm519, %v514, %v520
    %s531 = scalar_lea.vmem %s3, 32
    %v532 = vld [vmem:[%s531] sm:$0xff]
    %v533 = vld [vmem:[%s531 + $0x8] sm:$0xff]
    %v534 = vld [vmem:[%s531 + $0x10] sm:$0xff]
    %v535 = vld [vmem:[%s531 + $0x18] sm:$0xff]
    %v536 = vmul.f32 %v530, %v532
    %v537 = vmul.f32 %v522, %v533
    %v538 = vmul.f32 %v524, %v534
    %v539 = vmul.f32 %v525, %v535
    %v540 = vadd.f32 %v509, %v536
    %v541 = vadd.f32 %v510, %v537
    %v542 = vadd.f32 %v511, %v538
    %v543 = vadd.f32 %v512, %v539
    %v544 = vrot.slane %v489, 2
    %vm546 = vcmask 1045504
    %v547 = vrot.slane %v478, 2
    %v548 = vrot.slane %v481, 2
    %v549 = vsel %vm546, %v547, %v548
    %v550 = vrot.slane %v486, 2
    %v551 = vsel %vm546, %v548, %v550
    %v552 = vsel %vm546, %v550, %v544
    %v557 = vsel %vm546, %v544, %v547
    %s558 = scalar_lea.vmem %s3, 64
    %v559 = vld [vmem:[%s558] sm:$0xff]
    %v560 = vld [vmem:[%s558 + $0x8] sm:$0xff]
    %v561 = vld [vmem:[%s558 + $0x10] sm:$0xff]
    %v562 = vld [vmem:[%s558 + $0x18] sm:$0xff]
    %v563 = vmul.f32 %v557, %v559
    %v564 = vmul.f32 %v549, %v560
    %v565 = vmul.f32 %v551, %v561
    %v566 = vmul.f32 %v552, %v562
    %v567 = vadd.f32 %v540, %v563
    %v568 = vadd.f32 %v541, %v564
    %v569 = vadd.f32 %v542, %v565
    %v570 = vadd.f32 %v543, %v566
    %v571 = vrot.slane %v489, 3
    %vm573 = vcmask 1044480
    %v574 = vrot.slane %v478, 3
    %v575 = vrot.slane %v481, 3
    %v576 = vsel %vm573, %v574, %v575
    %v577 = vrot.slane %v486, 3
    %v578 = vsel %vm573, %v575, %v577
    %v579 = vsel %vm573, %v577, %v571
    %v584 = vsel %vm573, %v571, %v574
    %s585 = scalar_lea.vmem %s3, 96
    %v586 = vld [vmem:[%s585] sm:$0xff]
    %v587 = vld [vmem:[%s585 + $0x8] sm:$0xff]
    %v588 = vld [vmem:[%s585 + $0x10] sm:$0xff]
    %v589 = vld [vmem:[%s585 + $0x18] sm:$0xff]
    %v590 = vmul.f32 %v584, %v586
    %v591 = vmul.f32 %v576, %v587
    %v592 = vmul.f32 %v578, %v588
    %v593 = vmul.f32 %v579, %v589
    %v594 = vadd.f32 %v567, %v590
    %v595 = vadd.f32 %v568, %v591
    %v596 = vadd.f32 %v569, %v592
    %v597 = vadd.f32 %v570, %v593
    %v598 = vrot.slane %v489, 4
    %vm600 = vcmask 1043456
    %v601 = vrot.slane %v478, 4
    %v602 = vrot.slane %v481, 4
    %v603 = vsel %vm600, %v601, %v602
    %v604 = vrot.slane %v486, 4
    %v605 = vsel %vm600, %v602, %v604
    %v606 = vsel %vm600, %v604, %v598
    %v611 = vsel %vm600, %v598, %v601
    %s612 = scalar_lea.vmem %s3, 128
    %v613 = vld [vmem:[%s612] sm:$0xff]
    %v614 = vld [vmem:[%s612 + $0x8] sm:$0xff]
    %v615 = vld [vmem:[%s612 + $0x10] sm:$0xff]
    %v616 = vld [vmem:[%s612 + $0x18] sm:$0xff]
    %v617 = vmul.f32 %v611, %v613
    %v618 = vmul.f32 %v603, %v614
    %v619 = vmul.f32 %v605, %v615
    %v620 = vmul.f32 %v606, %v616
    %v621 = vadd.f32 %v594, %v617
    %v622 = vadd.f32 %v595, %v618
    %v623 = vadd.f32 %v596, %v619
    %v624 = vadd.f32 %v597, %v620
    %v625 = vrot.slane %v489, 5
    %vm627 = vcmask 1042432
    %v628 = vrot.slane %v478, 5
    %v629 = vrot.slane %v481, 5
    %v630 = vsel %vm627, %v628, %v629
    %v631 = vrot.slane %v486, 5
    %v632 = vsel %vm627, %v629, %v631
    %v633 = vsel %vm627, %v631, %v625
    %v638 = vsel %vm627, %v625, %v628
    %s639 = scalar_lea.vmem %s3, 160
    %v640 = vld [vmem:[%s639] sm:$0xff]
    %v641 = vld [vmem:[%s639 + $0x8] sm:$0xff]
    %v642 = vld [vmem:[%s639 + $0x10] sm:$0xff]
    %v643 = vld [vmem:[%s639 + $0x18] sm:$0xff]
    %v644 = vmul.f32 %v638, %v640
    %v645 = vmul.f32 %v630, %v641
    %v646 = vmul.f32 %v632, %v642
    %v647 = vmul.f32 %v633, %v643
    %v648 = vadd.f32 %v621, %v644
    %v649 = vadd.f32 %v622, %v645
    %v650 = vadd.f32 %v623, %v646
    %v651 = vadd.f32 %v624, %v647
    %v652 = vrot.slane %v489, 6
    %vm654 = vcmask 1041408
    %v655 = vrot.slane %v478, 6
    %v656 = vrot.slane %v481, 6
    %v657 = vsel %vm654, %v655, %v656
    %v658 = vrot.slane %v486, 6
    %v659 = vsel %vm654, %v656, %v658
    %v660 = vsel %vm654, %v658, %v652
    %v665 = vsel %vm654, %v652, %v655
    %s666 = scalar_lea.vmem %s3, 192
    %v667 = vld [vmem:[%s666] sm:$0xff]
    %v668 = vld [vmem:[%s666 + $0x8] sm:$0xff]
    %v669 = vld [vmem:[%s666 + $0x10] sm:$0xff]
    %v670 = vld [vmem:[%s666 + $0x18] sm:$0xff]
    %v671 = vmul.f32 %v665, %v667
    %v672 = vmul.f32 %v657, %v668
    %v673 = vmul.f32 %v659, %v669
    %v674 = vmul.f32 %v660, %v670
    %v675 = vadd.f32 %v648, %v671
    %v676 = vadd.f32 %v649, %v672
    %v677 = vadd.f32 %v650, %v673
    %v678 = vadd.f32 %v651, %v674
    %v679 = vrot.slane %v489, 7
    %vm681 = vcmask 1040384
    %v682 = vrot.slane %v478, 7
    %v683 = vrot.slane %v481, 7
    %v684 = vsel %vm681, %v682, %v683
    %v685 = vrot.slane %v486, 7
    %v686 = vsel %vm681, %v683, %v685
    %v687 = vsel %vm681, %v685, %v679
    %v692 = vsel %vm681, %v679, %v682
    %s693 = scalar_lea.vmem %s3, 224
    %v694 = vld [vmem:[%s693] sm:$0xff]
    %v695 = vld [vmem:[%s693 + $0x8] sm:$0xff]
    %v696 = vld [vmem:[%s693 + $0x10] sm:$0xff]
    %v697 = vld [vmem:[%s693 + $0x18] sm:$0xff]
    %v698 = vmul.f32 %v692, %v694
    %v699 = vmul.f32 %v684, %v695
    %v700 = vmul.f32 %v686, %v696
    %v701 = vmul.f32 %v687, %v697
    %v702 = vadd.f32 %v675, %v698
    %v703 = vadd.f32 %v676, %v699
    %v704 = vadd.f32 %v677, %v700
    %v705 = vadd.f32 %v678, %v701
    %s706 = scalar_lea.vmem %s3, 288
    %v707 = vld [vmem:[%s706] sm:$0xff]
    %v708 = vld [vmem:[%s706 + $0x8] sm:$0xff]
    %v709 = vld [vmem:[%s706 + $0x10] sm:$0xff]
    %v710 = vld [vmem:[%s706 + $0x18] sm:$0xff]
    %v711 = vmul.f32 %v522, %v707
    %v712 = vmul.f32 %v524, %v708
    %v713 = vmul.f32 %v525, %v709
    %v714 = vmul.f32 %v530, %v710
    %v715 = vadd.f32 %v702, %v711
    %v716 = vadd.f32 %v703, %v712
    %v717 = vadd.f32 %v704, %v713
    %v718 = vadd.f32 %v705, %v714
    %s719 = scalar_lea.vmem %s3, 320
    %v720 = vld [vmem:[%s719] sm:$0xff]
    %v721 = vld [vmem:[%s719 + $0x8] sm:$0xff]
    %v722 = vld [vmem:[%s719 + $0x10] sm:$0xff]
    %v723 = vld [vmem:[%s719 + $0x18] sm:$0xff]
    %v724 = vmul.f32 %v549, %v720
    %v725 = vmul.f32 %v551, %v721
    %v726 = vmul.f32 %v552, %v722
    %v727 = vmul.f32 %v557, %v723
    %v728 = vadd.f32 %v715, %v724
    %v729 = vadd.f32 %v716, %v725
    %v730 = vadd.f32 %v717, %v726
    %v731 = vadd.f32 %v718, %v727
    %s732 = scalar_lea.vmem %s3, 352
    %v733 = vld [vmem:[%s732] sm:$0xff]
    %v734 = vld [vmem:[%s732 + $0x8] sm:$0xff]
    %v735 = vld [vmem:[%s732 + $0x10] sm:$0xff]
    %v736 = vld [vmem:[%s732 + $0x18] sm:$0xff]
    %v737 = vmul.f32 %v576, %v733
    %v738 = vmul.f32 %v578, %v734
    %v739 = vmul.f32 %v579, %v735
    %v740 = vmul.f32 %v584, %v736
    %v741 = vadd.f32 %v728, %v737
    %v742 = vadd.f32 %v729, %v738
    %v743 = vadd.f32 %v730, %v739
    %v744 = vadd.f32 %v731, %v740
    %s745 = scalar_lea.vmem %s3, 384
    %v746 = vld [vmem:[%s745] sm:$0xff]
    %v747 = vld [vmem:[%s745 + $0x8] sm:$0xff]
    %v748 = vld [vmem:[%s745 + $0x10] sm:$0xff]
    %v749 = vld [vmem:[%s745 + $0x18] sm:$0xff]
    %v750 = vmul.f32 %v603, %v746
    %v751 = vmul.f32 %v605, %v747
    %v752 = vmul.f32 %v606, %v748
    %v753 = vmul.f32 %v611, %v749
    %v754 = vadd.f32 %v741, %v750
    %v755 = vadd.f32 %v742, %v751
    %v756 = vadd.f32 %v743, %v752
    %v757 = vadd.f32 %v744, %v753
    %s758 = scalar_lea.vmem %s3, 416
    %v759 = vld [vmem:[%s758] sm:$0xff]
    %v760 = vld [vmem:[%s758 + $0x8] sm:$0xff]
    %v761 = vld [vmem:[%s758 + $0x10] sm:$0xff]
    %v762 = vld [vmem:[%s758 + $0x18] sm:$0xff]
    %v763 = vmul.f32 %v630, %v759
    %v764 = vmul.f32 %v632, %v760
    %v765 = vmul.f32 %v633, %v761
    %v766 = vmul.f32 %v638, %v762
    %v767 = vadd.f32 %v754, %v763
    %v768 = vadd.f32 %v755, %v764
    %v769 = vadd.f32 %v756, %v765
    %v770 = vadd.f32 %v757, %v766
    %s771 = scalar_lea.vmem %s3, 448
    %v772 = vld [vmem:[%s771] sm:$0xff]
    %v773 = vld [vmem:[%s771 + $0x8] sm:$0xff]
    %v774 = vld [vmem:[%s771 + $0x10] sm:$0xff]
    %v775 = vld [vmem:[%s771 + $0x18] sm:$0xff]
    %v776 = vmul.f32 %v657, %v772
    %v777 = vmul.f32 %v659, %v773
    %v778 = vmul.f32 %v660, %v774
    %v779 = vmul.f32 %v665, %v775
    %v780 = vadd.f32 %v767, %v776
    %v781 = vadd.f32 %v768, %v777
    %v782 = vadd.f32 %v769, %v778
    %v783 = vadd.f32 %v770, %v779
    %s784 = scalar_lea.vmem %s3, 480
    %v785 = vld [vmem:[%s784] sm:$0xff]
    %v786 = vld [vmem:[%s784 + $0x8] sm:$0xff]
    %v787 = vld [vmem:[%s784 + $0x10] sm:$0xff]
    %v788 = vld [vmem:[%s784 + $0x18] sm:$0xff]
    %v789 = vmul.f32 %v684, %v785
    %v790 = vmul.f32 %v686, %v786
    %v791 = vmul.f32 %v687, %v787
    %v792 = vmul.f32 %v692, %v788
    %v793 = vadd.f32 %v780, %v789
    %v794 = vadd.f32 %v781, %v790
    %v795 = vadd.f32 %v782, %v791
    %v796 = vadd.f32 %v783, %v792
    %s797 = scalar_lea.vmem %s3, 512
    %v798 = vld [vmem:[%s797] sm:$0xff]
    %v799 = vld [vmem:[%s797 + $0x8] sm:$0xff]
    %v800 = vld [vmem:[%s797 + $0x10] sm:$0xff]
    %v801 = vld [vmem:[%s797 + $0x18] sm:$0xff]
    %v802 = vmul.f32 %v481, %v798
    %v803 = vmul.f32 %v486, %v799
    %v804 = vmul.f32 %v489, %v800
    %v805 = vmul.f32 %v478, %v801
    %v806 = vadd.f32 %v793, %v802
    %v807 = vadd.f32 %v794, %v803
    %v808 = vadd.f32 %v795, %v804
    %v809 = vadd.f32 %v796, %v805
    %v810 = vpack.c.bf16 %v807, %v806
    %v811 = vpack.c.bf16 %v809, %v808
    %v812 = vld [vmem:[%s4] sm:$0xf]
    %v813 = vld [vmem:[%s4 + $0x4] sm:$0xf]
    %v816 = vunpack.c.l.b16 %v812
    %v817 = vunpack.c.l.b16 %v813
    %v818 = vpack.c.b16 %v817, %v816
    %v821 = vsel %vm201, %v810, 0
    %v824 = vsel %vm201, %v811, 0
    %826 = vmatprep.subr.bf16.mxu0 0
    %827 = vmatpush1.bf16.msra.mxu0 0
    %828 = vmatprep.subr.bf16.mxu0 0
    %829 = vmatpush1.bf16.msra.mxu0 0
    %830 = vmatprep.subr.bf16.mxu0 0
    %831 = vmatpush1.bf16.msra.mxu0 0
    %832 = vmatprep.subr.bf16.mxu0 0
    %833 = vmatpush1.bf16.msra.mxu0 0
    %834 = vmatprep.subr.bf16.mxu0 0
    %835 = vmatpush1.bf16.msra.mxu0 0
    %836 = vmatprep.subr.bf16.mxu0 0
    %837 = vmatpush1.bf16.msra.mxu0 0
    %838 = vmatprep.subr.bf16.mxu0 0
    %839 = vmatpush1.bf16.msra.mxu0 0
    %840 = vmatprep.subr.bf16.mxu0 0
    %841 = vmatpush1.bf16.msra.mxu0 %v818
    %842 = vmatprep.subr.bf16.mxu0 0
    %843 = vmatpush2.bf16.msra.mxu0 0
    %844 = vmatprep.subr.bf16.mxu0 0
    %845 = vmatpush2.bf16.msra.mxu0 0
    %846 = vmatprep.subr.bf16.mxu0 0
    %847 = vmatpush2.bf16.msra.mxu0 0
    %848 = vmatprep.subr.bf16.mxu0 0
    %849 = vmatpush2.bf16.msra.mxu0 0
    %850 = vmatprep.subr.bf16.mxu0 0
    %851 = vmatpush2.bf16.msra.mxu0 0
    %852 = vmatprep.subr.bf16.mxu0 0
    %853 = vmatpush2.bf16.msra.mxu0 0
    %854 = vmatprep.subr.bf16.mxu0 0
    %855 = vmatpush2.bf16.msra.mxu0 0
    %856 = vmatprep.subr.bf16.mxu0 0
    %857 = vmatpush2.bf16.msra.mxu0 0
    %858 = vmatprep.mubr.bf16.mxu0 0
    %859 = vmatmul.mubr.bf16.gmra.mxu0 %v821
    %v860 = vpop.f32.mrf.mxu0
    %v861 = vadd.f32 %v35, %v860
    %v862 = vpop.f32.mrf.mxu0
    %v863 = vpop.f32.mrf.mxu0
    %v864 = vadd.f32 %v35, %v863
    %v865 = vpop.f32.mrf.mxu0
    %866 = vmatprep.mubr.bf16.mxu0 0
    %867 = vmatmul.mubr.bf16.gmra.mxu0 %v824
    %v868 = vpop.f32.mrf.mxu0
    %v869 = vadd.f32 %v35, %v868
    %v870 = vpop.f32.mrf.mxu0
    %v871 = vpop.f32.mrf.mxu0
    %v872 = vadd.f32 %v35, %v871
    %v873 = vpop.f32.mrf.mxu0
    %874 = vdwg.mxu0
    %vm875 = vcmp.gt.f32.partialorder %v861, 0.0
    %vm876 = vcmp.gt.f32.partialorder %v864, 0.0
    %vm877 = vcmp.gt.f32.partialorder %v869, 0.0
    %vm878 = vcmp.gt.f32.partialorder %v872, 0.0
    %v879 = vmin.f32 %v861, 0.0
    %v880 = vmin.f32 %v864, 0.0
    %v881 = vmin.f32 %v869, 0.0
    %v882 = vmin.f32 %v872, 0.0
    %v883 = vmul.f32 %v879, 1.442695
    %v884 = vpow.pop %v883
    %v885 = vmul.f32 %v880, 1.442695
    %v886 = vpow.pop %v885
    %v887 = vmul.f32 %v881, 1.442695
    %v888 = vpow.pop %v887
    %v889 = vmul.f32 %v882, 1.442695
    %v890 = vpow.pop %v889
    %v891 = vsub.f32 %v884, 1.0
    %v892 = vsub.f32 %v886, 1.0
    %v893 = vsub.f32 %v888, 1.0
    %v894 = vsub.f32 %v890, 1.0
    %v895 = vsel %vm875, %v861, %v891
    %v896 = vsel %vm876, %v864, %v892
    %v897 = vsel %vm877, %v869, %v893
    %v898 = vsel %vm878, %v872, %v894
    %v899 = vld [vmem:[%s5] sm:$0x3]
    %v900 = vpack.c.bf16 %v896, %v895
    %v901 = vpack.c.bf16 %v898, %v897
    %vm902 = vcmask 261120
    %v904 = vsel %vm902, %v899, 0
    %906 = vmatprep.subr.bf16.mxu0 0
    %907 = vmatpush1.bf16.msra.mxu0 0
    %908 = vmatprep.subr.bf16.mxu0 0
    %909 = vmatpush1.bf16.msra.mxu0 0
    %910 = vmatprep.subr.bf16.mxu0 0
    %911 = vmatpush1.bf16.msra.mxu0 0
    %912 = vmatprep.subr.bf16.mxu0 0
    %913 = vmatpush1.bf16.msra.mxu0 0
    %914 = vmatprep.subr.bf16.mxu0 0
    %915 = vmatpush1.bf16.msra.mxu0 0
    %916 = vmatprep.subr.bf16.mxu0 0
    %917 = vmatpush1.bf16.msra.mxu0 0
    %918 = vmatprep.subr.bf16.mxu0 0
    %919 = vmatpush1.bf16.msra.mxu0 %v901
    %920 = vmatprep.subr.bf16.mxu0 0
    %921 = vmatpush1.bf16.msra.mxu0 %v900
    %922 = vmatprep.subr.bf16.mxu0 0
    %923 = vmatpush2.bf16.msra.mxu0 0
    %924 = vmatprep.subr.bf16.mxu0 0
    %925 = vmatpush2.bf16.msra.mxu0 0
    %926 = vmatprep.subr.bf16.mxu0 0
    %927 = vmatpush2.bf16.msra.mxu0 0
    %928 = vmatprep.subr.bf16.mxu0 0
    %929 = vmatpush2.bf16.msra.mxu0 0
    %930 = vmatprep.subr.bf16.mxu0 0
    %931 = vmatpush2.bf16.msra.mxu0 0
    %932 = vmatprep.subr.bf16.mxu0 0
    %933 = vmatpush2.bf16.msra.mxu0 0
    %934 = vmatprep.subr.bf16.mxu0 0
    %935 = vmatpush2.bf16.msra.mxu0 0
    %936 = vmatprep.subr.bf16.mxu0 0
    %937 = vmatpush2.bf16.msra.mxu0 0
    %938 = vmatprep.mubr.bf16.mxu0 0
    %939 = vmatmul.mubr.bf16.gmra.mxu0 %v904
    %v940 = vpop.f32.mrf.mxu0
    %v941 = vadd.f32 0.0, %v940
    %v942 = vpop.f32.mrf.mxu0
    %v943 = vpop.f32.mrf.mxu0
    %v944 = vpop.f32.mrf.mxu0
    %945 = vdwg.mxu0
    %v946 = vld [vmem:[%s6] sm:$0xff]
    %v947 = vld [vmem:[%s6 + $0x8] sm:$0xff]
    %v948 = vld [vmem:[%s6 + $0x10] sm:$0xff]
    %v949 = vld [vmem:[%s6 + $0x18] sm:$0xff]
    %v950 = vld [vmem:[%s6 + $0x20] sm:$0xff]
    %v951 = vld [vmem:[%s6 + $0x28] sm:$0xff]
    %v952 = vld [vmem:[%s6 + $0x30] sm:$0xff]
    %v953 = vld [vmem:[%s6 + $0x38] sm:$0xff]
    %v954 = vld [vmem:[%s6 + $0x40] sm:$0xff]
    %v955 = vld [vmem:[%s6 + $0x48] sm:$0xff]
    %v956 = vld [vmem:[%s6 + $0x50] sm:$0xff]
    %v957 = vld [vmem:[%s6 + $0x58] sm:$0xff]
    %v958 = vld [vmem:[%s6 + $0x60] sm:$0xff]
    %v959 = vld [vmem:[%s6 + $0x68] sm:$0xff]
    %v960 = vld [vmem:[%s6 + $0x70] sm:$0xff]
    %v961 = vld [vmem:[%s6 + $0x78] sm:$0xff]
    %v962 = vld [vmem:[%s6 + $0x80] sm:$0xff]
    %v963 = vld [vmem:[%s6 + $0x88] sm:$0xff]
    %v964 = vld [vmem:[%s6 + $0x90] sm:$0xff]
    %v965 = vld [vmem:[%s6 + $0x98] sm:$0xff]
    %v966 = vld [vmem:[%s6 + $0xa0] sm:$0xff]
    %v967 = vld [vmem:[%s6 + $0xa8] sm:$0xff]
    %v968 = vld [vmem:[%s6 + $0xb0] sm:$0xff]
    %v969 = vld [vmem:[%s6 + $0xb8] sm:$0xff]
    %v970 = vld [vmem:[%s6 + $0xc0] sm:$0xff]
    %v971 = vld [vmem:[%s6 + $0xc8] sm:$0xff]
    %v972 = vld [vmem:[%s6 + $0xd0] sm:$0xff]
    %v973 = vld [vmem:[%s6 + $0xd8] sm:$0xff]
    %v974 = vld [vmem:[%s6 + $0xe0] sm:$0xff]
    %v975 = vld [vmem:[%s6 + $0xe8] sm:$0xff]
    %v976 = vld [vmem:[%s6 + $0xf0] sm:$0xff]
    %v977 = vld [vmem:[%s6 + $0xf8] sm:$0xff]
    %v978 = vld [vmem:[%s6 + $0x100] sm:$0xff]
    %v979 = vld [vmem:[%s6 + $0x108] sm:$0xff]
    %v980 = vld [vmem:[%s6 + $0x110] sm:$0xff]
    %v981 = vld [vmem:[%s6 + $0x118] sm:$0xff]
    %v983 = vrot.slane %v941, 2
    %984 = vrot.lane.b32.xlu0 %v983, 16
    %v985 = vpop.permute.xlu0 %984
    %v987 = vsel %vm201, %v941, %v985
    %v988 = vrot.slane %v941, 6
    %989 = vrot.lane.b32.xlu0 %v988, 16
    %v990 = vpop.permute.xlu0 %989
    %v992 = vsel %vm201, %v941, %v990
    %v993 = vsel %vm654, %v987, %v992
    %v994 = vpack.c.bf16 %v993, %v993
    %v996 = vlaneseq
    %v997 = vshrl.u32 %v996, 7
    %v998 = vsub.s32 0, %v997
    %v999 = vrot.slane %v37, %v998
    %v1000 = vlaneseq
    %v1001 = vshrl.u32 %v1000, 7
    %v1002 = vsub.s32 1, %v1001
    %v1003 = vrot.slane %v37, %v1002
    %v1010 = vunpack.c.l.b16 %v946
    %v1011 = vunpack.c.h.b16 %v946
    %v1012 = vunpack.c.l.b16 %v947
    %v1013 = vunpack.c.h.b16 %v947
    %v1014 = vunpack.c.l.b16 %v948
    %v1015 = vunpack.c.h.b16 %v948
    %v1016 = vunpack.c.l.b16 %v949
    %v1017 = vunpack.c.h.b16 %v949
    %v1018 = vpack.c.b16 %v1012, %v1010
    %v1019 = vpack.c.b16 %v1013, %v1011
    %v1020 = vpack.c.b16 %v1016, %v1014
    %v1021 = vpack.c.b16 %v1017, %v1015
    %v1027 = vsel %vm902, %v994, 0
    %1029 = vmatprep.subr.bf16.mxu0 0
    %1030 = vmatpush1.bf16.msra.mxu0 0
    %1031 = vmatprep.subr.bf16.mxu0 0
    %1032 = vmatpush1.bf16.msra.mxu0 0
    %1033 = vmatprep.subr.bf16.mxu0 0
    %1034 = vmatpush1.bf16.msra.mxu0 0
    %1035 = vmatprep.subr.bf16.mxu0 0
    %1036 = vmatpush1.bf16.msra.mxu0 0
    %1037 = vmatprep.subr.bf16.mxu0 0
    %1038 = vmatpush1.bf16.msra.mxu0 0
    %1039 = vmatprep.subr.bf16.mxu0 0
    %1040 = vmatpush1.bf16.msra.mxu0 0
    %1041 = vmatprep.subr.bf16.mxu0 %v1021
    %1042 = vmatpush1.bf16.msra.mxu0 %v1020
    %1043 = vmatprep.subr.bf16.mxu0 %v1019
    %1044 = vmatpush1.bf16.msra.mxu0 %v1018
    %1045 = vmatprep.subr.bf16.mxu0 0
    %1046 = vmatpush2.bf16.msra.mxu0 0
    %1047 = vmatprep.subr.bf16.mxu0 0
    %1048 = vmatpush2.bf16.msra.mxu0 0
    %1049 = vmatprep.subr.bf16.mxu0 0
    %1050 = vmatpush2.bf16.msra.mxu0 0
    %1051 = vmatprep.subr.bf16.mxu0 0
    %1052 = vmatpush2.bf16.msra.mxu0 0
    %1053 = vmatprep.subr.bf16.mxu0 0
    %1054 = vmatpush2.bf16.msra.mxu0 0
    %1055 = vmatprep.subr.bf16.mxu0 0
    %1056 = vmatpush2.bf16.msra.mxu0 0
    %1057 = vmatprep.subr.bf16.mxu0 0
    %1058 = vmatpush2.bf16.msra.mxu0 0
    %1059 = vmatprep.subr.bf16.mxu0 0
    %1060 = vmatpush2.bf16.msra.mxu0 0
    %1061 = vmatprep.mubr.bf16.mxu0 0
    %1062 = vmatmul.mubr.bf16.gmra.mxu0 %v1027
    %v1063 = vpop.f32.mrf.mxu0
    %v1064 = vadd.f32 %v999, %v1063
    %v1065 = vpop.f32.mrf.mxu0
    %v1066 = vadd.f32 %v1003, %v1065
    %v1067 = vpop.f32.mrf.mxu0
    %v1068 = vpop.f32.mrf.mxu0
    %1069 = vdwg.mxu0
    %v1070 = vxor.u32 %v1064, 2147483648
    %v1071 = vxor.u32 %v1066, 2147483648
    %v1072 = vmul.f32 %v1070, 1.442695
    %v1073 = vpow.pop %v1072
    %v1074 = vmul.f32 %v1071, 1.442695
    %v1075 = vpow.pop %v1074
    %v1076 = vadd.f32 %v1073, 1.0
    %v1077 = vadd.f32 %v1075, 1.0
    %v1078 = vrcp.pop %v1076
    %v1079 = vmul.f32 1.0, %v1078
    %v1080 = vrcp.pop %v1077
    %v1081 = vmul.f32 1.0, %v1080
    %v1082 = vtanh.pop %v1066
    %v1083 = vmul.f32 %v1079, 0.0
    %1085 = vrot.lane.b32.xlu0 %v1082, 64
    %v1086 = vpop.permute.xlu0 %1085
    %v1088 = vmul.f32 %v1079, %v1086
    %1090 = vrot.lane.b32.xlu0 %v1088, 64
    %v1091 = vpop.permute.xlu0 %1090
    %v1093 = vadd.f32 %v1083, %v1091
    %v1094 = vtanh.pop %v1093
    %1096 = vrot.lane.b32.xlu0 %v1094, 64
    %v1097 = vpop.permute.xlu0 %1096
    %v1099 = vmul.f32 %v1081, %v1097
    %v1100 = vpack.c.bf16 %v1099, %v1099
    %v1109 = vunpack.c.l.b16 %v950
    %v1110 = vunpack.c.h.b16 %v950
    %v1111 = vunpack.c.l.b16 %v951
    %v1112 = vunpack.c.h.b16 %v951
    %v1113 = vunpack.c.l.b16 %v952
    %v1114 = vunpack.c.h.b16 %v952
    %v1115 = vunpack.c.l.b16 %v953
    %v1116 = vunpack.c.h.b16 %v953
    %v1117 = vunpack.c.l.b16 %v954
    %v1118 = vunpack.c.h.b16 %v954
    %v1119 = vunpack.c.l.b16 %v955
    %v1120 = vunpack.c.h.b16 %v955
    %v1121 = vunpack.c.l.b16 %v956
    %v1122 = vunpack.c.h.b16 %v956
    %v1123 = vunpack.c.l.b16 %v957
    %v1124 = vunpack.c.h.b16 %v957
    %v1125 = vpack.c.b16 %v1111, %v1109
    %v1126 = vpack.c.b16 %v1112, %v1110
    %v1127 = vpack.c.b16 %v1115, %v1113
    %v1128 = vpack.c.b16 %v1116, %v1114
    %v1129 = vpack.c.b16 %v1119, %v1117
    %v1130 = vpack.c.b16 %v1120, %v1118
    %v1131 = vpack.c.b16 %v1123, %v1121
    %v1132 = vpack.c.b16 %v1124, %v1122
    %vm1141 = vcmask 523264
    %v1143 = vsel %vm1141, %v1100, 0
    %1145 = vmatprep.subr.bf16.mxu0 0
    %1146 = vmatpush1.bf16.msra.mxu0 0
    %1147 = vmatprep.subr.bf16.mxu0 0
    %1148 = vmatpush1.bf16.msra.mxu0 0
    %1149 = vmatprep.subr.bf16.mxu0 0
    %1150 = vmatpush1.bf16.msra.mxu0 0
    %1151 = vmatprep.subr.bf16.mxu0 0
    %1152 = vmatpush1.bf16.msra.mxu0 0
    %1153 = vmatprep.subr.bf16.mxu0 %v1132
    %1154 = vmatpush1.bf16.msra.mxu0 %v1131
    %1155 = vmatprep.subr.bf16.mxu0 %v1130
    %1156 = vmatpush1.bf16.msra.mxu0 %v1129
    %1157 = vmatprep.subr.bf16.mxu0 %v1128
    %1158 = vmatpush1.bf16.msra.mxu0 %v1127
    %1159 = vmatprep.subr.bf16.mxu0 %v1126
    %1160 = vmatpush1.bf16.msra.mxu0 %v1125
    %1161 = vmatprep.subr.bf16.mxu0 0
    %1162 = vmatpush2.bf16.msra.mxu0 0
    %1163 = vmatprep.subr.bf16.mxu0 0
    %1164 = vmatpush2.bf16.msra.mxu0 0
    %1165 = vmatprep.subr.bf16.mxu0 0
    %1166 = vmatpush2.bf16.msra.mxu0 0
    %1167 = vmatprep.subr.bf16.mxu0 0
    %1168 = vmatpush2.bf16.msra.mxu0 0
    %1169 = vmatprep.subr.bf16.mxu0 0
    %1170 = vmatpush2.bf16.msra.mxu0 0
    %1171 = vmatprep.subr.bf16.mxu0 0
    %1172 = vmatpush2.bf16.msra.mxu0 0
    %1173 = vmatprep.subr.bf16.mxu0 0
    %1174 = vmatpush2.bf16.msra.mxu0 0
    %1175 = vmatprep.subr.bf16.mxu0 0
    %1176 = vmatpush2.bf16.msra.mxu0 0
    %1177 = vmatprep.mubr.bf16.mxu0 0
    %1178 = vmatmul.mubr.bf16.gmra.mxu0 %v1143
    %v1179 = vpop.f32.mrf.mxu0
    %v1180 = vadd.f32 0.0, %v1179
    %v1181 = vpop.f32.mrf.mxu0
    %v1182 = vadd.f32 0.0, %v1181
    %v1183 = vpop.f32.mrf.mxu0
    %v1184 = vpop.f32.mrf.mxu0
    %1185 = vdwg.mxu0
    %v1188 = vrot.slane %v1180, 6
    %v1189 = vrot.slane %v1182, 6
    %v1192 = vadd.f32 %v1064, %v1188
    %v1193 = vadd.f32 %v1066, %v1189
    %v1194 = vxor.u32 %v1192, 2147483648
    %v1195 = vxor.u32 %v1193, 2147483648
    %v1196 = vmul.f32 %v1194, 1.442695
    %v1197 = vpow.pop %v1196
    %v1198 = vmul.f32 %v1195, 1.442695
    %v1199 = vpow.pop %v1198
    %v1200 = vadd.f32 %v1197, 1.0
    %v1201 = vadd.f32 %v1199, 1.0
    %v1202 = vrcp.pop %v1200
    %v1203 = vmul.f32 1.0, %v1202
    %v1204 = vrcp.pop %v1201
    %v1205 = vmul.f32 1.0, %v1204
    %v1206 = vtanh.pop %v1193
    %v1208 = vrot.slane %v1093, 6
    %v1210 = vmul.f32 %v1203, %v1208
    %1212 = vrot.lane.b32.xlu0 %v1206, 64
    %v1213 = vpop.permute.xlu0 %1212
    %v1215 = vmul.f32 %v1203, %v1213
    %1217 = vrot.lane.b32.xlu0 %v1215, 64
    %v1218 = vpop.permute.xlu0 %1217
    %v1220 = vadd.f32 %v1210, %v1218
    %v1221 = vtanh.pop %v1220
    %1223 = vrot.lane.b32.xlu0 %v1221, 64
    %v1224 = vpop.permute.xlu0 %1223
    %v1226 = vmul.f32 %v1205, %v1224
    %v1228 = vrot.slane %v1226, 2
    %v1230 = vsel %vm902, %v1099, %v1228
    %v1232 = vrot.slane %v1099, 6
    %v1234 = vsel %vm902, %v1226, %v1232
    %v1236 = vrot.slane %v1234, 2
    %1237 = vrot.lane.b32.xlu0 %v1236, 64
    %v1238 = vpop.permute.xlu0 %1237
    %v1240 = vsel %vm1141, %v1230, %v1238
    %v1242 = vrot.slane %v1230, 6
    %1243 = vrot.lane.b32.xlu0 %v1242, 64
    %v1244 = vpop.permute.xlu0 %1243
    %v1246 = vsel %vm1141, %v1234, %v1244
    %v1247 = vsel %vm654, %v1240, %v1246
    %v1248 = vpack.c.bf16 %v1247, %v1247
    %v1250 = vlaneseq
    %v1251 = vshrl.u32 %v1250, 7
    %v1252 = vsub.s32 0, %v1251
    %v1253 = vrot.slane %v39, %v1252
    %v1254 = vlaneseq
    %v1255 = vshrl.u32 %v1254, 7
    %v1256 = vsub.s32 1, %v1255
    %v1257 = vrot.slane %v39, %v1256
    %v1276 = vunpack.c.l.b16 %v958
    %v1277 = vunpack.c.h.b16 %v958
    %v1278 = vunpack.c.l.b16 %v959
    %v1279 = vunpack.c.h.b16 %v959
    %v1280 = vunpack.c.l.b16 %v960
    %v1281 = vunpack.c.h.b16 %v960
    %v1282 = vunpack.c.l.b16 %v961
    %v1283 = vunpack.c.h.b16 %v961
    %v1284 = vunpack.c.l.b16 %v962
    %v1285 = vunpack.c.h.b16 %v962
    %v1286 = vunpack.c.l.b16 %v963
    %v1287 = vunpack.c.h.b16 %v963
    %v1288 = vunpack.c.l.b16 %v964
    %v1289 = vunpack.c.h.b16 %v964
    %v1290 = vunpack.c.l.b16 %v965
    %v1291 = vunpack.c.h.b16 %v965
    %v1292 = vunpack.c.l.b16 %v966
    %v1293 = vunpack.c.h.b16 %v966
    %v1294 = vunpack.c.l.b16 %v967
    %v1295 = vunpack.c.h.b16 %v967
    %v1296 = vunpack.c.l.b16 %v968
    %v1297 = vunpack.c.h.b16 %v968
    %v1298 = vunpack.c.l.b16 %v969
    %v1299 = vunpack.c.h.b16 %v969
    %v1300 = vunpack.c.l.b16 %v970
    %v1301 = vunpack.c.h.b16 %v970
    %v1302 = vunpack.c.l.b16 %v971
    %v1303 = vunpack.c.h.b16 %v971
    %v1304 = vunpack.c.l.b16 %v972
    %v1305 = vunpack.c.h.b16 %v972
    %v1306 = vunpack.c.l.b16 %v973
    %v1307 = vunpack.c.h.b16 %v973
    %v1308 = vpack.c.b16 %v1278, %v1276
    %v1309 = vpack.c.b16 %v1279, %v1277
    %v1310 = vpack.c.b16 %v1282, %v1280
    %v1311 = vpack.c.b16 %v1283, %v1281
    %v1312 = vpack.c.b16 %v1286, %v1284
    %v1313 = vpack.c.b16 %v1287, %v1285
    %v1314 = vpack.c.b16 %v1290, %v1288
    %v1315 = vpack.c.b16 %v1291, %v1289
    %v1316 = vpack.c.b16 %v1294, %v1292
    %v1317 = vpack.c.b16 %v1295, %v1293
    %v1318 = vpack.c.b16 %v1298, %v1296
    %v1319 = vpack.c.b16 %v1299, %v1297
    %v1320 = vpack.c.b16 %v1302, %v1300
    %v1321 = vpack.c.b16 %v1303, %v1301
    %v1322 = vpack.c.b16 %v1306, %v1304
    %v1323 = vpack.c.b16 %v1307, %v1305
    %1340 = vmatprep.subr.bf16.mxu0 %v1323
    %1341 = vmatpush1.bf16.msra.mxu0 %v1322
    %1342 = vmatprep.subr.bf16.mxu0 %v1321
    %1343 = vmatpush1.bf16.msra.mxu0 %v1320
    %1344 = vmatprep.subr.bf16.mxu0 %v1319
    %1345 = vmatpush1.bf16.msra.mxu0 %v1318
    %1346 = vmatprep.subr.bf16.mxu0 %v1317
    %1347 = vmatpush1.bf16.msra.mxu0 %v1316
    %1348 = vmatprep.subr.bf16.mxu0 %v1315
    %1349 = vmatpush1.bf16.msra.mxu0 %v1314
    %1350 = vmatprep.subr.bf16.mxu0 %v1313
    %1351 = vmatpush1.bf16.msra.mxu0 %v1312
    %1352 = vmatprep.subr.bf16.mxu0 %v1311
    %1353 = vmatpush1.bf16.msra.mxu0 %v1310
    %1354 = vmatprep.subr.bf16.mxu0 %v1309
    %1355 = vmatpush1.bf16.msra.mxu0 %v1308
    %1356 = vmatprep.subr.bf16.mxu0 0
    %1357 = vmatpush2.bf16.msra.mxu0 0
    %1358 = vmatprep.subr.bf16.mxu0 0
    %1359 = vmatpush2.bf16.msra.mxu0 0
    %1360 = vmatprep.subr.bf16.mxu0 0
    %1361 = vmatpush2.bf16.msra.mxu0 0
    %1362 = vmatprep.subr.bf16.mxu0 0
    %1363 = vmatpush2.bf16.msra.mxu0 0
    %1364 = vmatprep.subr.bf16.mxu0 0
    %1365 = vmatpush2.bf16.msra.mxu0 0
    %1366 = vmatprep.subr.bf16.mxu0 0
    %1367 = vmatpush2.bf16.msra.mxu0 0
    %1368 = vmatprep.subr.bf16.mxu0 0
    %1369 = vmatpush2.bf16.msra.mxu0 0
    %1370 = vmatprep.subr.bf16.mxu0 0
    %1371 = vmatpush2.bf16.msra.mxu0 0
    %1372 = vmatprep.mubr.bf16.mxu0 0
    %1373 = vmatmul.mubr.bf16.gmra.mxu0 %v1248
    %v1374 = vpop.f32.mrf.mxu0
    %v1375 = vadd.f32 %v1253, %v1374
    %v1376 = vpop.f32.mrf.mxu0
    %v1377 = vadd.f32 %v1257, %v1376
    %v1378 = vpop.f32.mrf.mxu0
    %v1379 = vpop.f32.mrf.mxu0
    %1380 = vdwg.mxu0
    %v1381 = vxor.u32 %v1375, 2147483648
    %v1382 = vxor.u32 %v1377, 2147483648
    %v1383 = vmul.f32 %v1381, 1.442695
    %v1384 = vpow.pop %v1383
    %v1385 = vmul.f32 %v1382, 1.442695
    %v1386 = vpow.pop %v1385
    %v1387 = vadd.f32 %v1384, 1.0
    %v1388 = vadd.f32 %v1386, 1.0
    %v1389 = vrcp.pop %v1387
    %v1390 = vmul.f32 1.0, %v1389
    %v1391 = vrcp.pop %v1388
    %v1392 = vmul.f32 1.0, %v1391
    %v1393 = vtanh.pop %v1377
    %v1394 = vmul.f32 %v1390, 0.0
    %1396 = vrot.lane.b32.xlu0 %v1393, 64
    %v1397 = vpop.permute.xlu0 %1396
    %v1399 = vmul.f32 %v1390, %v1397
    %1401 = vrot.lane.b32.xlu0 %v1399, 64
    %v1402 = vpop.permute.xlu0 %1401
    %v1404 = vadd.f32 %v1394, %v1402
    %v1405 = vtanh.pop %v1404
    %1407 = vrot.lane.b32.xlu0 %v1405, 64
    %v1408 = vpop.permute.xlu0 %1407
    %v1410 = vmul.f32 %v1392, %v1408
    %v1411 = vpack.c.bf16 %v1410, %v1410
    %v1420 = vunpack.c.l.b16 %v974
    %v1421 = vunpack.c.h.b16 %v974
    %v1422 = vunpack.c.l.b16 %v975
    %v1423 = vunpack.c.h.b16 %v975
    %v1424 = vunpack.c.l.b16 %v976
    %v1425 = vunpack.c.h.b16 %v976
    %v1426 = vunpack.c.l.b16 %v977
    %v1427 = vunpack.c.h.b16 %v977
    %v1428 = vunpack.c.l.b16 %v978
    %v1429 = vunpack.c.h.b16 %v978
    %v1430 = vunpack.c.l.b16 %v979
    %v1431 = vunpack.c.h.b16 %v979
    %v1432 = vunpack.c.l.b16 %v980
    %v1433 = vunpack.c.h.b16 %v980
    %v1434 = vunpack.c.l.b16 %v981
    %v1435 = vunpack.c.h.b16 %v981
    %v1436 = vpack.c.b16 %v1422, %v1420
    %v1437 = vpack.c.b16 %v1423, %v1421
    %v1438 = vpack.c.b16 %v1426, %v1424
    %v1439 = vpack.c.b16 %v1427, %v1425
    %v1440 = vpack.c.b16 %v1430, %v1428
    %v1441 = vpack.c.b16 %v1431, %v1429
    %v1442 = vpack.c.b16 %v1434, %v1432
    %v1443 = vpack.c.b16 %v1435, %v1433
    %v1453 = vsel %vm1141, %v1411, 0
    %1455 = vmatprep.subr.bf16.mxu0 0
    %1456 = vmatpush1.bf16.msra.mxu0 0
    %1457 = vmatprep.subr.bf16.mxu0 0
    %1458 = vmatpush1.bf16.msra.mxu0 0
    %1459 = vmatprep.subr.bf16.mxu0 0
    %1460 = vmatpush1.bf16.msra.mxu0 0
    %1461 = vmatprep.subr.bf16.mxu0 0
    %1462 = vmatpush1.bf16.msra.mxu0 0
    %1463 = vmatprep.subr.bf16.mxu0 %v1443
    %1464 = vmatpush1.bf16.msra.mxu0 %v1442
    %1465 = vmatprep.subr.bf16.mxu0 %v1441
    %1466 = vmatpush1.bf16.msra.mxu0 %v1440
    %1467 = vmatprep.subr.bf16.mxu0 %v1439
    %1468 = vmatpush1.bf16.msra.mxu0 %v1438
    %1469 = vmatprep.subr.bf16.mxu0 %v1437
    %1470 = vmatpush1.bf16.msra.mxu0 %v1436
    %1471 = vmatprep.subr.bf16.mxu0 0
    %1472 = vmatpush2.bf16.msra.mxu0 0
    %1473 = vmatprep.subr.bf16.mxu0 0
    %1474 = vmatpush2.bf16.msra.mxu0 0
    %1475 = vmatprep.subr.bf16.mxu0 0
    %1476 = vmatpush2.bf16.msra.mxu0 0
    %1477 = vmatprep.subr.bf16.mxu0 0
    %1478 = vmatpush2.bf16.msra.mxu0 0
    %1479 = vmatprep.subr.bf16.mxu0 0
    %1480 = vmatpush2.bf16.msra.mxu0 0
    %1481 = vmatprep.subr.bf16.mxu0 0
    %1482 = vmatpush2.bf16.msra.mxu0 0
    %1483 = vmatprep.subr.bf16.mxu0 0
    %1484 = vmatpush2.bf16.msra.mxu0 0
    %1485 = vmatprep.subr.bf16.mxu0 0
    %1486 = vmatpush2.bf16.msra.mxu0 0
    %1487 = vmatprep.mubr.bf16.mxu0 0
    %1488 = vmatmul.mubr.bf16.gmra.mxu0 %v1453
    %v1489 = vpop.f32.mrf.mxu0
    %v1490 = vadd.f32 0.0, %v1489
    %v1491 = vpop.f32.mrf.mxu0
    %v1492 = vadd.f32 0.0, %v1491
    %v1493 = vpop.f32.mrf.mxu0
    %v1494 = vpop.f32.mrf.mxu0
    %1495 = vdwg.mxu0
    %v1498 = vrot.slane %v1490, 6
    %v1499 = vrot.slane %v1492, 6
    %v1502 = vadd.f32 %v1375, %v1498
    %v1503 = vadd.f32 %v1377, %v1499
    %v1504 = vxor.u32 %v1502, 2147483648
    %v1505 = vxor.u32 %v1503, 2147483648
    %v1506 = vmul.f32 %v1504, 1.442695
    %v1507 = vpow.pop %v1506
    %v1508 = vmul.f32 %v1505, 1.442695
    %v1509 = vpow.pop %v1508
    %v1510 = vadd.f32 %v1507, 1.0
    %v1511 = vadd.f32 %v1509, 1.0
    %v1512 = vrcp.pop %v1510
    %v1513 = vmul.f32 1.0, %v1512
    %v1514 = vrcp.pop %v1511
    %v1515 = vmul.f32 1.0, %v1514
    %v1516 = vtanh.pop %v1503
    %v1518 = vrot.slane %v1404, 6
    %v1520 = vmul.f32 %v1513, %v1518
    %1522 = vrot.lane.b32.xlu0 %v1516, 64
    %v1523 = vpop.permute.xlu0 %1522
    %v1525 = vmul.f32 %v1513, %v1523
    %1527 = vrot.lane.b32.xlu0 %v1525, 64
    %v1528 = vpop.permute.xlu0 %1527
    %v1530 = vadd.f32 %v1520, %v1528
    %v1531 = vtanh.pop %v1530
    %1533 = vrot.lane.b32.xlu0 %v1531, 64
    %v1534 = vpop.permute.xlu0 %1533
    %v1536 = vmul.f32 %v1515, %v1534
    %v1538 = vrot.slane %v1410, 6
    %v1540 = vsel %vm902, %v1536, %v1538
    %v1541 = vpack.c.bf16 %v1540, %v1540
    %v1542 = vld [vmem:[%s7] sm:$0xf]
    %v1543 = vld [vmem:[%s7 + $0x4] sm:$0xf]
    %v1544 = vld [vmem:[%s7 + $0x8] sm:$0xf]
    %v1545 = vld [vmem:[%s7 + $0xc] sm:$0xf]
    %v1546 = vld [vmem:[%s7 + $0x10] sm:$0xf]
    %v1547 = vld [vmem:[%s7 + $0x14] sm:$0xf]
    %v1548 = vld [vmem:[%s7 + $0x18] sm:$0xf]
    %v1549 = vld [vmem:[%s7 + $0x1c] sm:$0xf]
    %v1551 = vrot.slane %v1541, 1
    %v1560 = vunpack.c.l.b16 %v1542
    %v1561 = vunpack.c.l.b16 %v1543
    %v1562 = vunpack.c.l.b16 %v1544
    %v1563 = vunpack.c.l.b16 %v1545
    %v1564 = vunpack.c.l.b16 %v1546
    %v1565 = vunpack.c.l.b16 %v1547
    %v1566 = vunpack.c.l.b16 %v1548
    %v1567 = vunpack.c.l.b16 %v1549
    %v1568 = vpack.c.b16 %v1561, %v1560
    %v1569 = vpack.c.b16 %v1563, %v1562
    %v1570 = vpack.c.b16 %v1565, %v1564
    %v1571 = vpack.c.b16 %v1567, %v1566
    %v1577 = vsel %vm1141, %v1551, 0
    %1579 = vmatprep.subr.bf16.mxu0 0
    %1580 = vmatpush1.bf16.msra.mxu0 0
    %1581 = vmatprep.subr.bf16.mxu0 0
    %1582 = vmatpush1.bf16.msra.mxu0 0
    %1583 = vmatprep.subr.bf16.mxu0 0
    %1584 = vmatpush1.bf16.msra.mxu0 0
    %1585 = vmatprep.subr.bf16.mxu0 0
    %1586 = vmatpush1.bf16.msra.mxu0 0
    %1587 = vmatprep.subr.bf16.mxu0 0
    %1588 = vmatpush1.bf16.msra.mxu0 %v1571
    %1589 = vmatprep.subr.bf16.mxu0 0
    %1590 = vmatpush1.bf16.msra.mxu0 %v1570
    %1591 = vmatprep.subr.bf16.mxu0 0
    %1592 = vmatpush1.bf16.msra.mxu0 %v1569
    %1593 = vmatprep.subr.bf16.mxu0 0
    %1594 = vmatpush1.bf16.msra.mxu0 %v1568
    %1595 = vmatprep.subr.bf16.mxu0 0
    %1596 = vmatpush2.bf16.msra.mxu0 0
    %1597 = vmatprep.subr.bf16.mxu0 0
    %1598 = vmatpush2.bf16.msra.mxu0 0
    %1599 = vmatprep.subr.bf16.mxu0 0
    %1600 = vmatpush2.bf16.msra.mxu0 0
    %1601 = vmatprep.subr.bf16.mxu0 0
    %1602 = vmatpush2.bf16.msra.mxu0 0
    %1603 = vmatprep.subr.bf16.mxu0 0
    %1604 = vmatpush2.bf16.msra.mxu0 0
    %1605 = vmatprep.subr.bf16.mxu0 0
    %1606 = vmatpush2.bf16.msra.mxu0 0
    %1607 = vmatprep.subr.bf16.mxu0 0
    %1608 = vmatpush2.bf16.msra.mxu0 0
    %1609 = vmatprep.subr.bf16.mxu0 0
    %1610 = vmatpush2.bf16.msra.mxu0 0
    %1611 = vmatprep.mubr.bf16.mxu0 0
    %1612 = vmatmul.mubr.bf16.gmra.mxu0 %v1577
    %v1613 = vpop.f32.mrf.mxu0
    %v1614 = vadd.f32 %v40, %v1613
    %v1615 = vpop.f32.mrf.mxu0
    %v1616 = vpop.f32.mrf.mxu0
    %v1617 = vpop.f32.mrf.mxu0
    %1618 = vdwg.mxu0
    %v1619 = vsel %vm654, %v1614, -inf
    %1620 = vmax.xlane.f32.xlu0 %v1619
    %v1621 = vpop.xlane.xlu0 %1620
    %v1622 = vsub.f32 %v1614, %v1621
    %v1623 = vmul.f32 %v1622, 1.442695
    %v1624 = vpow.pop %v1623
    %v1625 = vsel %vm654, %v1624, 0.0
    %1626 = vadd.xlane.f32.xlu0 %v1625
    %v1627 = vpop.xlane.xlu0 %1626
    %v1628 = vlog2.pop %v1627
    %v1629 = vmul.f32 %v1628, 0.6931472
    %v1630 = vsub.f32 %v1622, %v1629
    %1631 = vst [vmem:[#allocation2] sm:$0x3] %v1630
    // Predicated region
    $region38: #{eegnet_lstm_forward.1} parent=1 // pred_check
      _
    $region39: #{eegnet_lstm_forward.1} parent=1 // pred_check_branch
      %1633 = sbr.rel (0) target = $region41
    $region40: #{eegnet_lstm_forward.1} parent=1 // pred_region
      %s1635 = ssub.s32 32, 32
      %1636 = vsyncadd [#allocation3], %s1635
      %s1638 = sshll.u32 [#allocation2], 4
      %s1639 = int_to_ptr.vmem [resolvable:$true] %s1638
      %1641 = dma.vmem_to_hbm [thread:$0]  %s1639, 32, %s9, [#allocation3]
    $region41: #{eegnet_lstm_forward.1} parent=1 // pred_fallthru
      _
    // Predicated region
    $region42: #{eegnet_lstm_forward.1} parent=1 // pred_check
      _
    $region43: #{eegnet_lstm_forward.1} parent=1 // pred_check_branch
      %1643 = sbr.rel (0) target = $region45
    $region44: #{eegnet_lstm_forward.1} parent=1 // pred_region
      %1644 = dma.done [#allocation3], 32
    $region45: #{eegnet_lstm_forward.1} parent=1 // pred_fallthru
      _
    %1645 = vsyncpa [#allocation3], 1

</llo_original>
